<compile_context>
chip_gen: v6e
topology: v6e:2x2x1
jax: 0.10.0
libtpu: 0.0.40
codegen_flags: <defaults>
</compile_context>

<pallas_src>
import math

import jax
import jax.numpy as jnp
from jax.experimental import pallas as pl
from jax.experimental.pallas import tpu as pltpu

# ----------------------- small example hyper-parameters ---------------------
B = 2            # batch
N = 8            # tokens
C_IN = 32        # in_features (= out_features)
HID = 128        # hidden_features (mlp_ratio = 4)

_LANE = 128      # lane width  (last dim alignment)
_SUB = 8         # sublane width (second-to-last dim alignment)


def _round_up(v, m):
    return ((v + m - 1) // m) * m


def _erf_poly(x):
    # Abramowitz & Stegun 7.1.26 rational approximation (max abs err 1.5e-7).
    # Built only from exp / mul / add / where, all natively lowered by Mosaic.
    p = 0.3275911
    a1, a2, a3, a4, a5 = (0.254829592, -0.284496736, 1.421413741,
                          -1.453152027, 1.061405429)
    ax = jnp.abs(x)
    t = 1.0 / (1.0 + p * ax)
    poly = ((((a5 * t + a4) * t + a3) * t + a2) * t + a1) * t
    y = 1.0 - poly * jnp.exp(-ax * ax)
    return jnp.where(x >= 0.0, y, -y)


def _gelu_exact(v):
    # nn.GELU default (approximate='none'): 0.5*x*(1+erf(x/sqrt(2)))
    return 0.5 * v * (1.0 + _erf_poly(v * (1.0 / math.sqrt(2.0))))


def mlp_kernel(x_ref, w1_ref, b1_ref, w2_ref, b2_ref, o_ref):
    x = x_ref[...]                                                    # (TM, Cin_p)
    h = jnp.dot(x, w1_ref[...],
                preferred_element_type=jnp.float32,
                precision=jax.lax.Precision.HIGHEST)                  # (TM, H_p)
    h = _gelu_exact(h + b1_ref[...])
    o = jnp.dot(h, w2_ref[...],
                preferred_element_type=jnp.float32,
                precision=jax.lax.Precision.HIGHEST)                  # (TM, Cout_p)
    o_ref[...] = (o + b2_ref[...]).astype(o_ref.dtype)


def mlp_forward(x, params, *, tile_m=512):
    """x: (B, N, C_in). Returns (B, N, C_out) = fc2(GELU(fc1(x)))."""
    w1, b1, w2, b2 = params                # w1:(Cin,H) b1:(1,H) w2:(H,Cout) b2:(1,Cout)
    Bx, Nx, Cin = x.shape
    Hd = w1.shape[1]
    Cout = w2.shape[1]
    M = Bx * Nx
    x2 = x.reshape(M, Cin)                 # MLP has no cross-token mixing: fuse B,N

    # --- lane-dense padding of feature dims (exact: zero-padded contributions
    # --- vanish through both matmuls and GELU(0)=0) ---
    cin_p = _round_up(Cin, _LANE)
    hd_p = _round_up(Hd, _LANE)
    cout_p = _round_up(Cout, _LANE)

    # --- M tiling ---
    tm = tile_m if M > tile_m else _round_up(M, _SUB)
    m_p = _round_up(M, tm)
    grid = (m_p // tm,)

    x_p = jnp.pad(x2, ((0, m_p - M), (0, cin_p - Cin)))
    w1_p = jnp.pad(w1, ((0, cin_p - Cin), (0, hd_p - Hd)))
    b1_p = jnp.pad(b1, ((0, 0), (0, hd_p - Hd)))
    w2_p = jnp.pad(w2, ((0, hd_p - Hd), (0, cout_p - Cout)))
    b2_p = jnp.pad(b2, ((0, 0), (0, cout_p - Cout)))

    # --- advisory cost estimate for the XLA scheduler ---
    flops = 2 * m_p * (cin_p * hd_p + hd_p * cout_p)
    bytes_accessed = 4 * (m_p * cin_p + cin_p * hd_p + hd_p
                          + hd_p * cout_p + cout_p + m_p * cout_p)
    cost = pl.CostEstimate(flops=flops, transcendentals=m_p * hd_p,
                           bytes_accessed=bytes_accessed)

    # --- VMEM budget: raise the scoped limit only if the plan needs it,
    # --- capped at 64 MiB so it stays valid on v7x (64 MiB physical). ---
    vmem_need = 4 * (2 * tm * cin_p + 2 * tm * cout_p      # double-buffered x/out tiles
                     + 2 * (cin_p * hd_p + hd_p * cout_p)  # resident weights (conservative x2)
                     + 2 * (hd_p + cout_p)                 # biases
                     + tm * hd_p)                          # hidden intermediate
    cp_kwargs = {"dimension_semantics": ("parallel",)}
    if vmem_need > 32 * 1024 * 1024:
        cp_kwargs["vmem_limit_bytes"] = min(int(vmem_need * 1.25), 64 * 1024 * 1024)

    out = pl.pallas_call(
        mlp_kernel,
        out_shape=jax.ShapeDtypeStruct((m_p, cout_p), x.dtype),
        grid=grid,
        in_specs=[
            pl.BlockSpec((tm, cin_p), lambda i: (i, 0)),    # x tile (pipelined)
            pl.BlockSpec((cin_p, hd_p), lambda i: (0, 0)),  # fc1 weight^T (resident)
            pl.BlockSpec((1, hd_p), lambda i: (0, 0)),      # fc1 bias     (resident)
            pl.BlockSpec((hd_p, cout_p), lambda i: (0, 0)), # fc2 weight^T (resident)
            pl.BlockSpec((1, cout_p), lambda i: (0, 0)),    # fc2 bias     (resident)
        ],
        out_specs=pl.BlockSpec((tm, cout_p), lambda i: (i, 0)),
        compiler_params=pltpu.CompilerParams(**cp_kwargs),
        cost_estimate=cost,
    )(x_p, w1_p, b1_p, w2_p, b2_p)

    return out[:M, :Cout].reshape(Bx, Nx, Cout)


# ------------------------------ reference (plain JAX) ------------------------
def mlp_forward_ref(x, params):
    w1, b1, w2, b2 = params
    h = _gelu_exact(jnp.dot(x, w1, precision=jax.lax.Precision.HIGHEST) + b1)
    return jnp.dot(h, w2, precision=jax.lax.Precision.HIGHEST) + b2


# ---------------------------------- params -----------------------------------
def make_params(key):
    keys = jax.random.split(key, 4)
    s = 0.02
    # nn.Linear stores weight as (out, in); pre-transpose to (in, out) so the
    # kernel computes x @ W.
    w1 = (s * jax.random.normal(keys[0], (HID, C_IN), jnp.float32)).T    # (C_IN, HID)
    b1 = s * jax.random.normal(keys[1], (1, HID), jnp.float32)
    w2 = (s * jax.random.normal(keys[2], (C_IN, HID), jnp.float32)).T    # (HID, C_IN)
    b2 = s * jax.random.normal(keys[3], (1, C_IN), jnp.float32)
    return (w1, b1, w2, b2)


# ----------------------------------- main -------------------------------------
if __name__ == "__main__":
    key = jax.random.PRNGKey(0)
    kx, kp = jax.random.split(key)
    x = jax.random.normal(kx, (B, N, C_IN), jnp.float32)
    params = make_params(kp)

    out = mlp_forward(x, params)
    out = jax.block_until_ready(out)

    ref = mlp_forward_ref(x, params)
    assert out.shape == (B, N, C_IN)
    assert bool(jnp.allclose(out, ref, atol=1e-5, rtol=1e-5)), "mismatch vs reference"
    print("KERNEL_OK")
</pallas_src>

<mosaic_0001>
module attributes {stable_mosaic.version = 11 : i64} {
  func.func @mlp_kernel(%arg0: i32, %arg1: memref<16x128xf32, #tpu.memory_space<vmem>>, %arg2: memref<128x128xf32, #tpu.memory_space<vmem>>, %arg3: memref<1x128xf32, #tpu.memory_space<vmem>>, %arg4: memref<128x128xf32, #tpu.memory_space<vmem>>, %arg5: memref<1x128xf32, #tpu.memory_space<vmem>>, %arg6: memref<16x128xf32, #tpu.memory_space<vmem>>) attributes {dimension_semantics = [#tpu.dimension_semantics<parallel>], iteration_bounds = array<i64: 1>, scalar_prefetch = 0 : i64, scratch_operands = 0 : i64, tpu.core_type = #tpu.core_type<tc>, window_params = [{transform_indices = @transform_0, window_bounds = array<i64: 16, 128>}, {pipeline_mode = #tpu.pipeline_mode<synchronous>, transform_indices = @transform_1, window_bounds = array<i64: 128, 128>}, {pipeline_mode = #tpu.pipeline_mode<synchronous>, transform_indices = @transform_2, window_bounds = array<i64: 1, 128>}, {pipeline_mode = #tpu.pipeline_mode<synchronous>, transform_indices = @transform_3, window_bounds = array<i64: 128, 128>}, {pipeline_mode = #tpu.pipeline_mode<synchronous>, transform_indices = @transform_4, window_bounds = array<i64: 1, 128>}, {transform_indices = @transform_5, window_bounds = array<i64: 16, 128>}]} {
    %c0 = arith.constant 0 : index
    %c0_0 = arith.constant 0 : index
    %0 = vector.load %arg1[%c0, %c0_0] : memref<16x128xf32, #tpu.memory_space<vmem>>, vector<16x128xf32>
    %c0_1 = arith.constant 0 : index
    %c0_2 = arith.constant 0 : index
    %1 = vector.load %arg2[%c0_1, %c0_2] : memref<128x128xf32, #tpu.memory_space<vmem>>, vector<128x128xf32>
    %cst = arith.constant dense<0.000000e+00> : vector<16x128xf32>
    %2 = tpu.matmul %0, %1, %cst {dimension_numbers = #tpu.dot_dimension_numbers<[1], [0], [0], [1], [0, 0, 1, 1], [], []>, precision = #tpu.contract_precision<fp32>} : vector<16x128xf32>, vector<128x128xf32>, vector<16x128xf32> -> vector<16x128xf32>
    %c0_3 = arith.constant 0 : index
    %c0_4 = arith.constant 0 : index
    %3 = vector.load %arg3[%c0_3, %c0_4] : memref<1x128xf32, #tpu.memory_space<vmem>>, vector<1x128xf32>
    %4 = vector.broadcast %3 : vector<1x128xf32> to vector<16x128xf32>
    %5 = arith.addf %2, %4 : vector<16x128xf32>
    %cst_5 = arith.constant 5.000000e-01 : f32
    %6 = vector.broadcast %cst_5 : f32 to vector<16x128xf32>
    %7 = arith.mulf %6, %5 : vector<16x128xf32>
    %cst_6 = arith.constant 0.707106769 : f32
    %8 = vector.broadcast %cst_6 : f32 to vector<16x128xf32>
    %9 = arith.mulf %5, %8 : vector<16x128xf32>
    %10 = math.absf %9 : vector<16x128xf32>
    %cst_7 = arith.constant 0.327591091 : f32
    %11 = vector.broadcast %cst_7 : f32 to vector<16x128xf32>
    %12 = arith.mulf %11, %10 : vector<16x128xf32>
    %cst_8 = arith.constant 1.000000e+00 : f32
    %13 = vector.broadcast %cst_8 : f32 to vector<16x128xf32>
    %14 = arith.addf %13, %12 : vector<16x128xf32>
    %cst_9 = arith.constant 1.000000e+00 : f32
    %15 = vector.broadcast %cst_9 : f32 to vector<16x128xf32>
    %16 = arith.divf %15, %14 : vector<16x128xf32>
    %cst_10 = arith.constant 1.06140542 : f32
    %17 = vector.broadcast %cst_10 : f32 to vector<16x128xf32>
    %18 = arith.mulf %17, %16 : vector<16x128xf32>
    %cst_11 = arith.constant -1.45315206 : f32
    %19 = vector.broadcast %cst_11 : f32 to vector<16x128xf32>
    %20 = arith.addf %18, %19 : vector<16x128xf32>
    %21 = arith.mulf %20, %16 : vector<16x128xf32>
    %cst_12 = arith.constant 1.42141378 : f32
    %22 = vector.broadcast %cst_12 : f32 to vector<16x128xf32>
    %23 = arith.addf %21, %22 : vector<16x128xf32>
    %24 = arith.mulf %23, %16 : vector<16x128xf32>
    %cst_13 = arith.constant -0.284496725 : f32
    %25 = vector.broadcast %cst_13 : f32 to vector<16x128xf32>
    %26 = arith.addf %24, %25 : vector<16x128xf32>
    %27 = arith.mulf %26, %16 : vector<16x128xf32>
    %cst_14 = arith.constant 0.254829586 : f32
    %28 = vector.broadcast %cst_14 : f32 to vector<16x128xf32>
    %29 = arith.addf %27, %28 : vector<16x128xf32>
    %30 = arith.mulf %29, %16 : vector<16x128xf32>
    %cst_15 = arith.constant 0.000000e+00 : f32
    %31 = vector.broadcast %cst_15 : f32 to vector<16x128xf32>
    %32 = arith.subf %31, %10 : vector<16x128xf32>
    %33 = arith.mulf %32, %10 : vector<16x128xf32>
    %34 = math.exp %33 : vector<16x128xf32>
    %35 = arith.mulf %30, %34 : vector<16x128xf32>
    %cst_16 = arith.constant 1.000000e+00 : f32
    %36 = vector.broadcast %cst_16 : f32 to vector<16x128xf32>
    %37 = arith.subf %36, %35 : vector<16x128xf32>
    %cst_17 = arith.constant 0.000000e+00 : f32
    %38 = vector.broadcast %cst_17 : f32 to vector<16x128xf32>
    %39 = arith.cmpf oge, %9, %38 : vector<16x128xf32>
    %cst_18 = arith.constant 0.000000e+00 : f32
    %40 = vector.broadcast %cst_18 : f32 to vector<16x128xf32>
    %41 = arith.subf %40, %37 : vector<16x128xf32>
    %42 = arith.select %39, %37, %41 : vector<16x128xi1>, vector<16x128xf32>
    %cst_19 = arith.constant 1.000000e+00 : f32
    %43 = vector.broadcast %cst_19 : f32 to vector<16x128xf32>
    %44 = arith.addf %43, %42 : vector<16x128xf32>
    %45 = arith.mulf %7, %44 : vector<16x128xf32>
    %c0_20 = arith.constant 0 : index
    %c0_21 = arith.constant 0 : index
    %46 = vector.load %arg4[%c0_20, %c0_21] : memref<128x128xf32, #tpu.memory_space<vmem>>, vector<128x128xf32>
    %cst_22 = arith.constant dense<0.000000e+00> : vector<16x128xf32>
    %47 = tpu.matmul %45, %46, %cst_22 {dimension_numbers = #tpu.dot_dimension_numbers<[1], [0], [0], [1], [0, 0, 1, 1], [], []>, precision = #tpu.contract_precision<fp32>} : vector<16x128xf32>, vector<128x128xf32>, vector<16x128xf32> -> vector<16x128xf32>
    %c0_23 = arith.constant 0 : index
    %c0_24 = arith.constant 0 : index
    %48 = vector.load %arg5[%c0_23, %c0_24] : memref<1x128xf32, #tpu.memory_space<vmem>>, vector<1x128xf32>
    %49 = vector.broadcast %48 : vector<1x128xf32> to vector<16x128xf32>
    %50 = arith.addf %47, %49 : vector<16x128xf32>
    %c0_25 = arith.constant 0 : index
    %c0_26 = arith.constant 0 : index
    %51 = vector.load %arg6[%c0_25, %c0_26] : memref<16x128xf32, #tpu.memory_space<vmem>>, vector<16x128xf32>
    tpu.vector_store %arg6[%c0_25, %c0_26], %50 {strides = array<i32>} : memref<16x128xf32, #tpu.memory_space<vmem>>, vector<16x128xf32>,
    return
  }
  func.func @transform_0(%arg0: i32) -> (i32, i32) {
    %c0_i32 = arith.constant 0 : i32
    %c0_i32_0 = arith.constant 0 : i32
    return %arg0, %c0_i32 : i32, i32
  }
  func.func @transform_1(%arg0: i32) -> (i32, i32) {
    %c0_i32 = arith.constant 0 : i32
    %c0_i32_0 = arith.constant 0 : i32
    %c0_i32_1 = arith.constant 0 : i32
    return %c0_i32, %c0_i32_0 : i32, i32
  }
  func.func @transform_2(%arg0: i32) -> (i32, i32) {
    %c0_i32 = arith.constant 0 : i32
    %c0_i32_0 = arith.constant 0 : i32
    %c0_i32_1 = arith.constant 0 : i32
    return %c0_i32, %c0_i32_0 : i32, i32
  }
  func.func @transform_3(%arg0: i32) -> (i32, i32) {
    %c0_i32 = arith.constant 0 : i32
    %c0_i32_0 = arith.constant 0 : i32
    %c0_i32_1 = arith.constant 0 : i32
    return %c0_i32, %c0_i32_0 : i32, i32
  }
  func.func @transform_4(%arg0: i32) -> (i32, i32) {
    %c0_i32 = arith.constant 0 : i32
    %c0_i32_0 = arith.constant 0 : i32
    %c0_i32_1 = arith.constant 0 : i32
    return %c0_i32, %c0_i32_0 : i32, i32
  }
  func.func @transform_5(%arg0: i32) -> (i32, i32) {
    %c0_i32 = arith.constant 0 : i32
    %c0_i32_0 = arith.constant 0 : i32
    return %arg0, %c0_i32 : i32, i32
  }
}

</mosaic_0001>

<llo_original>
// kernel: tpu_custom_call.1
$region0: #{tpu_custom_call.1}
  #allocation0 [shape = 'u32[]', space=smem, size = 0x4, offset = 0x4, fixed_abs, tag = 'smem constant byte address 0x4 - core index']
  #allocation1 [shape = 'u32[144,128]{1,0:T(1,128)}', space=vmem, size = 0x12000, scoped, tag = 'internal scratch']
  %s0 = inlined_call_operand.hbm [shape: f32[16,128], index: 0, kind: input, shape index: {}]
  %s1 = inlined_call_operand.hbm [shape: f32[128,128], index: 1, kind: input, shape index: {}]
  %s2 = inlined_call_operand.vmem [shape: f32[1,128], index: 2, kind: input, shape index: {}]
  %s3 = inlined_call_operand.hbm [shape: f32[128,128], index: 3, kind: input, shape index: {}]
  %s4 = inlined_call_operand.vmem [shape: f32[1,128], index: 4, kind: input, shape index: {}]
  %s5 = inlined_call_operand.hbm [shape: f32[16,128], index: 5, kind: output, shape index: {}]
  %s6 = sld [smem:[#allocation0]]
  $region42: #{tpu_custom_call.1} parent=0
    _
  %s8 = ssub.s32 1, %s6
  %s9 = scalar_select 0, %s8, %s6
  $region1: #{tpu_custom_call.1} parent=0
    #allocation2 [shape = 'u8[8192]{0}', space=vmem, size = 0x2000, scoped, tag = 'input window, operand 0, single buffered']
    #allocation3 [shape = 's32[1]{0}', space=sflag, size = 0x4, scoped, tag = 'scoped memory for tpu_custom_call.1']
    #allocation4 [shape = 's32[1]{0}', space=sflag, size = 0x4, scoped, tag = 'scoped memory for tpu_custom_call.1']
    #allocation5 [shape = 'u8[65536]{0}', space=vmem, size = 0x10000, scoped, tag = 'input window, operand 1, single buffered']
    #allocation6 [shape = 's32[1]{0}', space=sflag, size = 0x4, scoped, tag = 'scoped memory for tpu_custom_call.1']
    #allocation7 [shape = 'u8[65536]{0}', space=vmem, size = 0x10000, scoped, tag = 'input window, operand 3, single buffered']
    #allocation8 [shape = 'u8[8192]{0}', space=vmem, size = 0x2000, scoped, tag = 'output window, operand 0, single buffered']
    %10 = vsyncpa [#allocation3], 0
    %11 = vsyncpa [#allocation6], 0
    %12 = vsyncpa [#allocation4], 0
    // Predicated region
    $region2: #{tpu_custom_call.1} parent=1 // pred_check
      _
    $region3: #{tpu_custom_call.1} parent=1 // pred_check_branch
      %14 = sbr.rel (0) target = $region5
    $region4: #{tpu_custom_call.1} parent=1 // pred_region
      %s16 = ssub.s32 256, 256
      %17 = vsyncadd [#allocation3], %s16
      %s18 = sshll.u32 [#allocation2], 4
      %s19 = int_to_ptr.vmem [resolvable:$true] %s18
      %24 = dma.hbm_to_vmem [thread:$0]  %s0, 256, %s19, [#allocation3], 128, 128, 8
    $region5: #{tpu_custom_call.1} parent=1 // pred_fallthru
      _
    // Predicated region
    $region6: #{tpu_custom_call.1} parent=1 // pred_check
      _
    $region7: #{tpu_custom_call.1} parent=1 // pred_check_branch
      %26 = sbr.rel (0) target = $region9
    $region8: #{tpu_custom_call.1} parent=1 // pred_region
      %s28 = ssub.s32 2048, 2048
      %29 = vsyncadd [#allocation6], %s28
      %s30 = sshll.u32 [#allocation5], 4
      %s31 = int_to_ptr.vmem [resolvable:$true] %s30
      %36 = dma.hbm_to_vmem [thread:$0]  %s1, 2048, %s31, [#allocation6], 128, 128, 8
    $region9: #{tpu_custom_call.1} parent=1 // pred_fallthru
      _
    // Predicated region
    $region10: #{tpu_custom_call.1} parent=1 // pred_check
      _
    $region11: #{tpu_custom_call.1} parent=1 // pred_check_branch
      %38 = sbr.rel (0) target = $region13
    $region12: #{tpu_custom_call.1} parent=1 // pred_region
      _
    $region13: #{tpu_custom_call.1} parent=1 // pred_fallthru
      _
    // Predicated region
    $region14: #{tpu_custom_call.1} parent=1 // pred_check
      _
    $region15: #{tpu_custom_call.1} parent=1 // pred_check_branch
      %40 = sbr.rel (0) target = $region17
    $region16: #{tpu_custom_call.1} parent=1 // pred_region
      %s42 = ssub.s32 2048, 2048
      %43 = vsyncadd [#allocation6], %s42
      %s44 = sshll.u32 [#allocation7], 4
      %s45 = int_to_ptr.vmem [resolvable:$true] %s44
      %50 = dma.hbm_to_vmem [thread:$0]  %s3, 2048, %s45, [#allocation6], 128, 128, 8
    $region17: #{tpu_custom_call.1} parent=1 // pred_fallthru
      _
    // Predicated region
    $region18: #{tpu_custom_call.1} parent=1 // pred_check
      _
    $region19: #{tpu_custom_call.1} parent=1 // pred_check_branch
      %52 = sbr.rel (0) target = $region21
    $region20: #{tpu_custom_call.1} parent=1 // pred_region
      _
    $region21: #{tpu_custom_call.1} parent=1 // pred_fallthru
      _
    // Predicated region
    $region22: #{tpu_custom_call.1} parent=1 // pred_check
      _
    $region23: #{tpu_custom_call.1} parent=1 // pred_check_branch
      %54 = sbr.rel (0) target = $region25
    $region24: #{tpu_custom_call.1} parent=1 // pred_region
      %55 = dma.done [#allocation3], 256
    $region25: #{tpu_custom_call.1} parent=1 // pred_fallthru
      _
    // Predicated region
    $region26: #{tpu_custom_call.1} parent=1 // pred_check
      _
    $region27: #{tpu_custom_call.1} parent=1 // pred_check_branch
      %57 = sbr.rel (0) target = $region29
    $region28: #{tpu_custom_call.1} parent=1 // pred_region
      %58 = dma.done [#allocation6], 2048
    $region29: #{tpu_custom_call.1} parent=1 // pred_fallthru
      _
    // Predicated region
    $region30: #{tpu_custom_call.1} parent=1 // pred_check
      _
    $region31: #{tpu_custom_call.1} parent=1 // pred_check_branch
      %60 = sbr.rel (0) target = $region33
    $region32: #{tpu_custom_call.1} parent=1 // pred_region
      %61 = dma.done [#allocation6], 2048
    $region33: #{tpu_custom_call.1} parent=1 // pred_fallthru
      _
    %v62 = vld [vmem:[#allocation2] sm:$0xff]
    %v63 = vld [vmem:[#allocation2 + $0x8] sm:$0xff]
    %v64 = vld [vmem:[#allocation5] sm:$0xff]
    %v65 = vld [vmem:[#allocation5 + $0x8] sm:$0xff]
    %v66 = vld [vmem:[#allocation5 + $0x10] sm:$0xff]
    %v67 = vld [vmem:[#allocation5 + $0x18] sm:$0xff]
    %v68 = vld [vmem:[#allocation5 + $0x20] sm:$0xff]
    %v69 = vld [vmem:[#allocation5 + $0x28] sm:$0xff]
    %v70 = vld [vmem:[#allocation5 + $0x30] sm:$0xff]
    %v71 = vld [vmem:[#allocation5 + $0x38] sm:$0xff]
    %v72 = vld [vmem:[#allocation5 + $0x40] sm:$0xff]
    %v73 = vld [vmem:[#allocation5 + $0x48] sm:$0xff]
    %v74 = vld [vmem:[#allocation5 + $0x50] sm:$0xff]
    %v75 = vld [vmem:[#allocation5 + $0x58] sm:$0xff]
    %v76 = vld [vmem:[#allocation5 + $0x60] sm:$0xff]
    %v77 = vld [vmem:[#allocation5 + $0x68] sm:$0xff]
    %v78 = vld [vmem:[#allocation5 + $0x70] sm:$0xff]
    %v79 = vld [vmem:[#allocation5 + $0x78] sm:$0xff]
    %v80 = vld [vmem:[%s2] sm:$0x1]
    %v82 = vlaneseq
    %v83 = vshrl.u32 %v82, 7
    %v84 = vsub.s32 0, %v83
    %v85 = vrot.slane %v80, %v84
    %87 = vmatprep.subr.mxu0 0.0
    %v88 = vand.u32 %v79, 4294901760
    %89 = vmatpush1.msra.mxu0 %v88
    %90 = vmatprep.subr.mxu0 0.0
    %v91 = vand.u32 %v78, 4294901760
    %92 = vmatpush1.msra.mxu0 %v91
    %93 = vmatprep.subr.mxu0 0.0
    %v94 = vand.u32 %v77, 4294901760
    %95 = vmatpush1.msra.mxu0 %v94
    %96 = vmatprep.subr.mxu0 0.0
    %v97 = vand.u32 %v76, 4294901760
    %98 = vmatpush1.msra.mxu0 %v97
    %99 = vmatprep.subr.mxu0 0.0
    %v100 = vand.u32 %v75, 4294901760
    %101 = vmatpush1.msra.mxu0 %v100
    %102 = vmatprep.subr.mxu0 0.0
    %v103 = vand.u32 %v74, 4294901760
    %104 = vmatpush1.msra.mxu0 %v103
    %105 = vmatprep.subr.mxu0 0.0
    %v106 = vand.u32 %v73, 4294901760
    %107 = vmatpush1.msra.mxu0 %v106
    %108 = vmatprep.subr.mxu0 0.0
    %v109 = vand.u32 %v72, 4294901760
    %110 = vmatpush1.msra.mxu0 %v109
    %111 = vmatprep.subr.mxu0 0.0
    %v112 = vand.u32 %v71, 4294901760
    %113 = vmatpush1.msra.mxu0 %v112
    %114 = vmatprep.subr.mxu0 0.0
    %v115 = vand.u32 %v70, 4294901760
    %116 = vmatpush1.msra.mxu0 %v115
    %117 = vmatprep.subr.mxu0 0.0
    %v118 = vand.u32 %v69, 4294901760
    %119 = vmatpush1.msra.mxu0 %v118
    %120 = vmatprep.subr.mxu0 0.0
    %v121 = vand.u32 %v68, 4294901760
    %122 = vmatpush1.msra.mxu0 %v121
    %123 = vmatprep.subr.mxu0 0.0
    %v124 = vand.u32 %v67, 4294901760
    %125 = vmatpush1.msra.mxu0 %v124
    %126 = vmatprep.subr.mxu0 0.0
    %v127 = vand.u32 %v66, 4294901760
    %128 = vmatpush1.msra.mxu0 %v127
    %129 = vmatprep.subr.mxu0 0.0
    %v130 = vand.u32 %v65, 4294901760
    %131 = vmatpush1.msra.mxu0 %v130
    %132 = vmatprep.subr.mxu0 0.0
    %v133 = vand.u32 %v64, 4294901760
    %134 = vmatpush1.msra.mxu0 %v133
    %135 = vmatprep.subr.mxu0 0.0
    %136 = vmatpush2.msra.mxu0 0.0
    %137 = vmatprep.subr.mxu0 0.0
    %138 = vmatpush2.msra.mxu0 0.0
    %139 = vmatprep.subr.mxu0 0.0
    %140 = vmatpush2.msra.mxu0 0.0
    %141 = vmatprep.subr.mxu0 0.0
    %142 = vmatpush2.msra.mxu0 0.0
    %143 = vmatprep.subr.mxu0 0.0
    %144 = vmatpush2.msra.mxu0 0.0
    %145 = vmatprep.subr.mxu0 0.0
    %146 = vmatpush2.msra.mxu0 0.0
    %147 = vmatprep.subr.mxu0 0.0
    %148 = vmatpush2.msra.mxu0 0.0
    %149 = vmatprep.subr.mxu0 0.0
    %150 = vmatpush2.msra.mxu0 0.0
    %151 = vmatprep.subr.mxu0 0.0
    %152 = vmatpush2.msra.mxu0 0.0
    %153 = vmatprep.subr.mxu0 0.0
    %154 = vmatpush2.msra.mxu0 0.0
    %155 = vmatprep.subr.mxu0 0.0
    %156 = vmatpush2.msra.mxu0 0.0
    %157 = vmatprep.subr.mxu0 0.0
    %158 = vmatpush2.msra.mxu0 0.0
    %159 = vmatprep.subr.mxu0 0.0
    %160 = vmatpush2.msra.mxu0 0.0
    %161 = vmatprep.subr.mxu0 0.0
    %162 = vmatpush2.msra.mxu0 0.0
    %163 = vmatprep.subr.mxu0 0.0
    %164 = vmatpush2.msra.mxu0 0.0
    %165 = vmatprep.subr.mxu0 0.0
    %166 = vmatpush2.msra.mxu0 0.0
    %167 = vmatprep.mubr.f32.mxu0 0.0
    %v168 = vand.u32 %v62, 4294901760
    %v169 = vsub.f32 %v62, %v168
    %v170 = vand.u32 %v169, 4294901760
    %v171 = vsub.f32 %v169, %v170
    %v172 = vand.u32 %v171, 4294901760
    %173 = vmatmul.mubr.f32.gmra.mxu0 %v172
    %v174 = vpop.f32.mrf.mxu0
    %v175 = vadd.f32 %v85, %v174
    %v176 = vpop.f32.mrf.mxu0
    %177 = vmatprep.mubr.f32.mxu0 0.0
    %v178 = vand.u32 %v63, 4294901760
    %v179 = vsub.f32 %v63, %v178
    %v180 = vand.u32 %v179, 4294901760
    %v181 = vsub.f32 %v179, %v180
    %v182 = vand.u32 %v181, 4294901760
    %183 = vmatmul.mubr.f32.gmra.mxu0 %v182
    %v184 = vpop.f32.mrf.mxu0
    %v185 = vadd.f32 %v85, %v184
    %v186 = vpop.f32.mrf.mxu0
    %187 = vdwg.mxu0
    %188 = vmatprep.subr.mxu0 0.0
    %v189 = vand.u32 %v79, 4294901760
    %v190 = vsub.f32 %v79, %v189
    %v191 = vand.u32 %v190, 4294901760
    %v192 = vsub.f32 %v190, %v191
    %v193 = vand.u32 %v192, 4294901760
    %194 = vmatpush1.msra.mxu0 %v193
    %195 = vmatprep.subr.mxu0 0.0
    %v196 = vand.u32 %v78, 4294901760
    %v197 = vsub.f32 %v78, %v196
    %v198 = vand.u32 %v197, 4294901760
    %v199 = vsub.f32 %v197, %v198
    %v200 = vand.u32 %v199, 4294901760
    %201 = vmatpush1.msra.mxu0 %v200
    %202 = vmatprep.subr.mxu0 0.0
    %v203 = vand.u32 %v77, 4294901760
    %v204 = vsub.f32 %v77, %v203
    %v205 = vand.u32 %v204, 4294901760
    %v206 = vsub.f32 %v204, %v205
    %v207 = vand.u32 %v206, 4294901760
    %208 = vmatpush1.msra.mxu0 %v207
    %209 = vmatprep.subr.mxu0 0.0
    %v210 = vand.u32 %v76, 4294901760
    %v211 = vsub.f32 %v76, %v210
    %v212 = vand.u32 %v211, 4294901760
    %v213 = vsub.f32 %v211, %v212
    %v214 = vand.u32 %v213, 4294901760
    %215 = vmatpush1.msra.mxu0 %v214
    %216 = vmatprep.subr.mxu0 0.0
    %v217 = vand.u32 %v75, 4294901760
    %v218 = vsub.f32 %v75, %v217
    %v219 = vand.u32 %v218, 4294901760
    %v220 = vsub.f32 %v218, %v219
    %v221 = vand.u32 %v220, 4294901760
    %222 = vmatpush1.msra.mxu0 %v221
    %223 = vmatprep.subr.mxu0 0.0
    %v224 = vand.u32 %v74, 4294901760
    %v225 = vsub.f32 %v74, %v224
    %v226 = vand.u32 %v225, 4294901760
    %v227 = vsub.f32 %v225, %v226
    %v228 = vand.u32 %v227, 4294901760
    %229 = vmatpush1.msra.mxu0 %v228
    %230 = vmatprep.subr.mxu0 0.0
    %v231 = vand.u32 %v73, 4294901760
    %v232 = vsub.f32 %v73, %v231
    %v233 = vand.u32 %v232, 4294901760
    %v234 = vsub.f32 %v232, %v233
    %v235 = vand.u32 %v234, 4294901760
    %236 = vmatpush1.msra.mxu0 %v235
    %237 = vmatprep.subr.mxu0 0.0
    %v238 = vand.u32 %v72, 4294901760
    %v239 = vsub.f32 %v72, %v238
    %v240 = vand.u32 %v239, 4294901760
    %v241 = vsub.f32 %v239, %v240
    %v242 = vand.u32 %v241, 4294901760
    %243 = vmatpush1.msra.mxu0 %v242
    %244 = vmatprep.subr.mxu0 0.0
    %v245 = vand.u32 %v71, 4294901760
    %v246 = vsub.f32 %v71, %v245
    %v247 = vand.u32 %v246, 4294901760
    %v248 = vsub.f32 %v246, %v247
    %v249 = vand.u32 %v248, 4294901760
    %250 = vmatpush1.msra.mxu0 %v249
    %251 = vmatprep.subr.mxu0 0.0
    %v252 = vand.u32 %v70, 4294901760
    %v253 = vsub.f32 %v70, %v252
    %v254 = vand.u32 %v253, 4294901760
    %v255 = vsub.f32 %v253, %v254
    %v256 = vand.u32 %v255, 4294901760
    %257 = vmatpush1.msra.mxu0 %v256
    %258 = vmatprep.subr.mxu0 0.0
    %v259 = vand.u32 %v69, 4294901760
    %v260 = vsub.f32 %v69, %v259
    %v261 = vand.u32 %v260, 4294901760
    %v262 = vsub.f32 %v260, %v261
    %v263 = vand.u32 %v262, 4294901760
    %264 = vmatpush1.msra.mxu0 %v263
    %265 = vmatprep.subr.mxu0 0.0
    %v266 = vand.u32 %v68, 4294901760
    %v267 = vsub.f32 %v68, %v266
    %v268 = vand.u32 %v267, 4294901760
    %v269 = vsub.f32 %v267, %v268
    %v270 = vand.u32 %v269, 4294901760
    %271 = vmatpush1.msra.mxu0 %v270
    %272 = vmatprep.subr.mxu0 0.0
    %v273 = vand.u32 %v67, 4294901760
    %v274 = vsub.f32 %v67, %v273
    %v275 = vand.u32 %v274, 4294901760
    %v276 = vsub.f32 %v274, %v275
    %v277 = vand.u32 %v276, 4294901760
    %278 = vmatpush1.msra.mxu0 %v277
    %279 = vmatprep.subr.mxu0 0.0
    %v280 = vand.u32 %v66, 4294901760
    %v281 = vsub.f32 %v66, %v280
    %v282 = vand.u32 %v281, 4294901760
    %v283 = vsub.f32 %v281, %v282
    %v284 = vand.u32 %v283, 4294901760
    %285 = vmatpush1.msra.mxu0 %v284
    %286 = vmatprep.subr.mxu0 0.0
    %v287 = vand.u32 %v65, 4294901760
    %v288 = vsub.f32 %v65, %v287
    %v289 = vand.u32 %v288, 4294901760
    %v290 = vsub.f32 %v288, %v289
    %v291 = vand.u32 %v290, 4294901760
    %292 = vmatpush1.msra.mxu0 %v291
    %293 = vmatprep.subr.mxu0 0.0
    %v294 = vand.u32 %v64, 4294901760
    %v295 = vsub.f32 %v64, %v294
    %v296 = vand.u32 %v295, 4294901760
    %v297 = vsub.f32 %v295, %v296
    %v298 = vand.u32 %v297, 4294901760
    %299 = vmatpush1.msra.mxu0 %v298
    %300 = vmatprep.subr.mxu0 0.0
    %301 = vmatpush2.msra.mxu0 0.0
    %302 = vmatprep.subr.mxu0 0.0
    %303 = vmatpush2.msra.mxu0 0.0
    %304 = vmatprep.subr.mxu0 0.0
    %305 = vmatpush2.msra.mxu0 0.0
    %306 = vmatprep.subr.mxu0 0.0
    %307 = vmatpush2.msra.mxu0 0.0
    %308 = vmatprep.subr.mxu0 0.0
    %309 = vmatpush2.msra.mxu0 0.0
    %310 = vmatprep.subr.mxu0 0.0
    %311 = vmatpush2.msra.mxu0 0.0
    %312 = vmatprep.subr.mxu0 0.0
    %313 = vmatpush2.msra.mxu0 0.0
    %314 = vmatprep.subr.mxu0 0.0
    %315 = vmatpush2.msra.mxu0 0.0
    %316 = vmatprep.subr.mxu0 0.0
    %317 = vmatpush2.msra.mxu0 0.0
    %318 = vmatprep.subr.mxu0 0.0
    %319 = vmatpush2.msra.mxu0 0.0
    %320 = vmatprep.subr.mxu0 0.0
    %321 = vmatpush2.msra.mxu0 0.0
    %322 = vmatprep.subr.mxu0 0.0
    %323 = vmatpush2.msra.mxu0 0.0
    %324 = vmatprep.subr.mxu0 0.0
    %325 = vmatpush2.msra.mxu0 0.0
    %326 = vmatprep.subr.mxu0 0.0
    %327 = vmatpush2.msra.mxu0 0.0
    %328 = vmatprep.subr.mxu0 0.0
    %329 = vmatpush2.msra.mxu0 0.0
    %330 = vmatprep.subr.mxu0 0.0
    %331 = vmatpush2.msra.mxu0 0.0
    %332 = vmatprep.mubr.f32.mxu0 0.0
    %v333 = vand.u32 %v62, 4294901760
    %334 = vmatmul.mubr.f32.gmra.mxu0 %v333
    %v335 = vpop.f32.mrf.mxu0
    %v336 = vadd.f32 %v175, %v335
    %v337 = vpop.f32.mrf.mxu0
    %338 = vmatprep.mubr.f32.mxu0 0.0
    %v339 = vand.u32 %v63, 4294901760
    %340 = vmatmul.mubr.f32.gmra.mxu0 %v339
    %v341 = vpop.f32.mrf.mxu0
    %v342 = vadd.f32 %v185, %v341
    %v343 = vpop.f32.mrf.mxu0
    %344 = vdwg.mxu0
    %345 = vmatprep.subr.mxu0 0.0
    %v346 = vand.u32 %v79, 4294901760
    %v347 = vsub.f32 %v79, %v346
    %348 = vmatpush1.msra.mxu0 %v347
    %349 = vmatprep.subr.mxu0 0.0
    %v350 = vand.u32 %v78, 4294901760
    %v351 = vsub.f32 %v78, %v350
    %352 = vmatpush1.msra.mxu0 %v351
    %353 = vmatprep.subr.mxu0 0.0
    %v354 = vand.u32 %v77, 4294901760
    %v355 = vsub.f32 %v77, %v354
    %356 = vmatpush1.msra.mxu0 %v355
    %357 = vmatprep.subr.mxu0 0.0
    %v358 = vand.u32 %v76, 4294901760
    %v359 = vsub.f32 %v76, %v358
    %360 = vmatpush1.msra.mxu0 %v359
    %361 = vmatprep.subr.mxu0 0.0
    %v362 = vand.u32 %v75, 4294901760
    %v363 = vsub.f32 %v75, %v362
    %364 = vmatpush1.msra.mxu0 %v363
    %365 = vmatprep.subr.mxu0 0.0
    %v366 = vand.u32 %v74, 4294901760
    %v367 = vsub.f32 %v74, %v366
    %368 = vmatpush1.msra.mxu0 %v367
    %369 = vmatprep.subr.mxu0 0.0
    %v370 = vand.u32 %v73, 4294901760
    %v371 = vsub.f32 %v73, %v370
    %372 = vmatpush1.msra.mxu0 %v371
    %373 = vmatprep.subr.mxu0 0.0
    %v374 = vand.u32 %v72, 4294901760
    %v375 = vsub.f32 %v72, %v374
    %376 = vmatpush1.msra.mxu0 %v375
    %377 = vmatprep.subr.mxu0 0.0
    %v378 = vand.u32 %v71, 4294901760
    %v379 = vsub.f32 %v71, %v378
    %380 = vmatpush1.msra.mxu0 %v379
    %381 = vmatprep.subr.mxu0 0.0
    %v382 = vand.u32 %v70, 4294901760
    %v383 = vsub.f32 %v70, %v382
    %384 = vmatpush1.msra.mxu0 %v383
    %385 = vmatprep.subr.mxu0 0.0
    %v386 = vand.u32 %v69, 4294901760
    %v387 = vsub.f32 %v69, %v386
    %388 = vmatpush1.msra.mxu0 %v387
    %389 = vmatprep.subr.mxu0 0.0
    %v390 = vand.u32 %v68, 4294901760
    %v391 = vsub.f32 %v68, %v390
    %392 = vmatpush1.msra.mxu0 %v391
    %393 = vmatprep.subr.mxu0 0.0
    %v394 = vand.u32 %v67, 4294901760
    %v395 = vsub.f32 %v67, %v394
    %396 = vmatpush1.msra.mxu0 %v395
    %397 = vmatprep.subr.mxu0 0.0
    %v398 = vand.u32 %v66, 4294901760
    %v399 = vsub.f32 %v66, %v398
    %400 = vmatpush1.msra.mxu0 %v399
    %401 = vmatprep.subr.mxu0 0.0
    %v402 = vand.u32 %v65, 4294901760
    %v403 = vsub.f32 %v65, %v402
    %404 = vmatpush1.msra.mxu0 %v403
    %405 = vmatprep.subr.mxu0 0.0
    %v406 = vand.u32 %v64, 4294901760
    %v407 = vsub.f32 %v64, %v406
    %408 = vmatpush1.msra.mxu0 %v407
    %409 = vmatprep.subr.mxu0 0.0
    %410 = vmatpush2.msra.mxu0 0.0
    %411 = vmatprep.subr.mxu0 0.0
    %412 = vmatpush2.msra.mxu0 0.0
    %413 = vmatprep.subr.mxu0 0.0
    %414 = vmatpush2.msra.mxu0 0.0
    %415 = vmatprep.subr.mxu0 0.0
    %416 = vmatpush2.msra.mxu0 0.0
    %417 = vmatprep.subr.mxu0 0.0
    %418 = vmatpush2.msra.mxu0 0.0
    %419 = vmatprep.subr.mxu0 0.0
    %420 = vmatpush2.msra.mxu0 0.0
    %421 = vmatprep.subr.mxu0 0.0
    %422 = vmatpush2.msra.mxu0 0.0
    %423 = vmatprep.subr.mxu0 0.0
    %424 = vmatpush2.msra.mxu0 0.0
    %425 = vmatprep.subr.mxu0 0.0
    %426 = vmatpush2.msra.mxu0 0.0
    %427 = vmatprep.subr.mxu0 0.0
    %428 = vmatpush2.msra.mxu0 0.0
    %429 = vmatprep.subr.mxu0 0.0
    %430 = vmatpush2.msra.mxu0 0.0
    %431 = vmatprep.subr.mxu0 0.0
    %432 = vmatpush2.msra.mxu0 0.0
    %433 = vmatprep.subr.mxu0 0.0
    %434 = vmatpush2.msra.mxu0 0.0
    %435 = vmatprep.subr.mxu0 0.0
    %436 = vmatpush2.msra.mxu0 0.0
    %437 = vmatprep.subr.mxu0 0.0
    %438 = vmatpush2.msra.mxu0 0.0
    %439 = vmatprep.subr.mxu0 0.0
    %440 = vmatpush2.msra.mxu0 0.0
    %441 = vmatprep.mubr.f32.mxu0 0.0
    %v442 = vand.u32 %v62, 4294901760
    %v443 = vsub.f32 %v62, %v442
    %444 = vmatmul.mubr.f32.gmra.mxu0 %v443
    %v445 = vpop.f32.mrf.mxu0
    %v446 = vadd.f32 %v336, %v445
    %v447 = vpop.f32.mrf.mxu0
    %448 = vmatprep.mubr.f32.mxu0 0.0
    %v449 = vand.u32 %v63, 4294901760
    %v450 = vsub.f32 %v63, %v449
    %451 = vmatmul.mubr.f32.gmra.mxu0 %v450
    %v452 = vpop.f32.mrf.mxu0
    %v453 = vadd.f32 %v342, %v452
    %v454 = vpop.f32.mrf.mxu0
    %455 = vdwg.mxu0
    %456 = vmatprep.subr.mxu0 0.0
    %v457 = vand.u32 %v79, 4294901760
    %458 = vmatpush1.msra.mxu0 %v457
    %459 = vmatprep.subr.mxu0 0.0
    %v460 = vand.u32 %v78, 4294901760
    %461 = vmatpush1.msra.mxu0 %v460
    %462 = vmatprep.subr.mxu0 0.0
    %v463 = vand.u32 %v77, 4294901760
    %464 = vmatpush1.msra.mxu0 %v463
    %465 = vmatprep.subr.mxu0 0.0
    %v466 = vand.u32 %v76, 4294901760
    %467 = vmatpush1.msra.mxu0 %v466
    %468 = vmatprep.subr.mxu0 0.0
    %v469 = vand.u32 %v75, 4294901760
    %470 = vmatpush1.msra.mxu0 %v469
    %471 = vmatprep.subr.mxu0 0.0
    %v472 = vand.u32 %v74, 4294901760
    %473 = vmatpush1.msra.mxu0 %v472
    %474 = vmatprep.subr.mxu0 0.0
    %v475 = vand.u32 %v73, 4294901760
    %476 = vmatpush1.msra.mxu0 %v475
    %477 = vmatprep.subr.mxu0 0.0
    %v478 = vand.u32 %v72, 4294901760
    %479 = vmatpush1.msra.mxu0 %v478
    %480 = vmatprep.subr.mxu0 0.0
    %v481 = vand.u32 %v71, 4294901760
    %482 = vmatpush1.msra.mxu0 %v481
    %483 = vmatprep.subr.mxu0 0.0
    %v484 = vand.u32 %v70, 4294901760
    %485 = vmatpush1.msra.mxu0 %v484
    %486 = vmatprep.subr.mxu0 0.0
    %v487 = vand.u32 %v69, 4294901760
    %488 = vmatpush1.msra.mxu0 %v487
    %489 = vmatprep.subr.mxu0 0.0
    %v490 = vand.u32 %v68, 4294901760
    %491 = vmatpush1.msra.mxu0 %v490
    %492 = vmatprep.subr.mxu0 0.0
    %v493 = vand.u32 %v67, 4294901760
    %494 = vmatpush1.msra.mxu0 %v493
    %495 = vmatprep.subr.mxu0 0.0
    %v496 = vand.u32 %v66, 4294901760
    %497 = vmatpush1.msra.mxu0 %v496
    %498 = vmatprep.subr.mxu0 0.0
    %v499 = vand.u32 %v65, 4294901760
    %500 = vmatpush1.msra.mxu0 %v499
    %501 = vmatprep.subr.mxu0 0.0
    %v502 = vand.u32 %v64, 4294901760
    %503 = vmatpush1.msra.mxu0 %v502
    %504 = vmatprep.subr.mxu0 0.0
    %505 = vmatpush2.msra.mxu0 0.0
    %506 = vmatprep.subr.mxu0 0.0
    %507 = vmatpush2.msra.mxu0 0.0
    %508 = vmatprep.subr.mxu0 0.0
    %509 = vmatpush2.msra.mxu0 0.0
    %510 = vmatprep.subr.mxu0 0.0
    %511 = vmatpush2.msra.mxu0 0.0
    %512 = vmatprep.subr.mxu0 0.0
    %513 = vmatpush2.msra.mxu0 0.0
    %514 = vmatprep.subr.mxu0 0.0
    %515 = vmatpush2.msra.mxu0 0.0
    %516 = vmatprep.subr.mxu0 0.0
    %517 = vmatpush2.msra.mxu0 0.0
    %518 = vmatprep.subr.mxu0 0.0
    %519 = vmatpush2.msra.mxu0 0.0
    %520 = vmatprep.subr.mxu0 0.0
    %521 = vmatpush2.msra.mxu0 0.0
    %522 = vmatprep.subr.mxu0 0.0
    %523 = vmatpush2.msra.mxu0 0.0
    %524 = vmatprep.subr.mxu0 0.0
    %525 = vmatpush2.msra.mxu0 0.0
    %526 = vmatprep.subr.mxu0 0.0
    %527 = vmatpush2.msra.mxu0 0.0
    %528 = vmatprep.subr.mxu0 0.0
    %529 = vmatpush2.msra.mxu0 0.0
    %530 = vmatprep.subr.mxu0 0.0
    %531 = vmatpush2.msra.mxu0 0.0
    %532 = vmatprep.subr.mxu0 0.0
    %533 = vmatpush2.msra.mxu0 0.0
    %534 = vmatprep.subr.mxu0 0.0
    %535 = vmatpush2.msra.mxu0 0.0
    %536 = vmatprep.mubr.f32.mxu0 0.0
    %v537 = vand.u32 %v62, 4294901760
    %v538 = vsub.f32 %v62, %v537
    %v539 = vand.u32 %v538, 4294901760
    %540 = vmatmul.mubr.f32.gmra.mxu0 %v539
    %v541 = vpop.f32.mrf.mxu0
    %v542 = vadd.f32 %v446, %v541
    %v543 = vpop.f32.mrf.mxu0
    %544 = vmatprep.mubr.f32.mxu0 0.0
    %v545 = vand.u32 %v63, 4294901760
    %v546 = vsub.f32 %v63, %v545
    %v547 = vand.u32 %v546, 4294901760
    %548 = vmatmul.mubr.f32.gmra.mxu0 %v547
    %v549 = vpop.f32.mrf.mxu0
    %v550 = vadd.f32 %v453, %v549
    %v551 = vpop.f32.mrf.mxu0
    %552 = vdwg.mxu0
    %553 = vmatprep.subr.mxu0 0.0
    %v554 = vand.u32 %v79, 4294901760
    %v555 = vsub.f32 %v79, %v554
    %v556 = vand.u32 %v555, 4294901760
    %557 = vmatpush1.msra.mxu0 %v556
    %558 = vmatprep.subr.mxu0 0.0
    %v559 = vand.u32 %v78, 4294901760
    %v560 = vsub.f32 %v78, %v559
    %v561 = vand.u32 %v560, 4294901760
    %562 = vmatpush1.msra.mxu0 %v561
    %563 = vmatprep.subr.mxu0 0.0
    %v564 = vand.u32 %v77, 4294901760
    %v565 = vsub.f32 %v77, %v564
    %v566 = vand.u32 %v565, 4294901760
    %567 = vmatpush1.msra.mxu0 %v566
    %568 = vmatprep.subr.mxu0 0.0
    %v569 = vand.u32 %v76, 4294901760
    %v570 = vsub.f32 %v76, %v569
    %v571 = vand.u32 %v570, 4294901760
    %572 = vmatpush1.msra.mxu0 %v571
    %573 = vmatprep.subr.mxu0 0.0
    %v574 = vand.u32 %v75, 4294901760
    %v575 = vsub.f32 %v75, %v574
    %v576 = vand.u32 %v575, 4294901760
    %577 = vmatpush1.msra.mxu0 %v576
    %578 = vmatprep.subr.mxu0 0.0
    %v579 = vand.u32 %v74, 4294901760
    %v580 = vsub.f32 %v74, %v579
    %v581 = vand.u32 %v580, 4294901760
    %582 = vmatpush1.msra.mxu0 %v581
    %583 = vmatprep.subr.mxu0 0.0
    %v584 = vand.u32 %v73, 4294901760
    %v585 = vsub.f32 %v73, %v584
    %v586 = vand.u32 %v585, 4294901760
    %587 = vmatpush1.msra.mxu0 %v586
    %588 = vmatprep.subr.mxu0 0.0
    %v589 = vand.u32 %v72, 4294901760
    %v590 = vsub.f32 %v72, %v589
    %v591 = vand.u32 %v590, 4294901760
    %592 = vmatpush1.msra.mxu0 %v591
    %593 = vmatprep.subr.mxu0 0.0
    %v594 = vand.u32 %v71, 4294901760
    %v595 = vsub.f32 %v71, %v594
    %v596 = vand.u32 %v595, 4294901760
    %597 = vmatpush1.msra.mxu0 %v596
    %598 = vmatprep.subr.mxu0 0.0
    %v599 = vand.u32 %v70, 4294901760
    %v600 = vsub.f32 %v70, %v599
    %v601 = vand.u32 %v600, 4294901760
    %602 = vmatpush1.msra.mxu0 %v601
    %603 = vmatprep.subr.mxu0 0.0
    %v604 = vand.u32 %v69, 4294901760
    %v605 = vsub.f32 %v69, %v604
    %v606 = vand.u32 %v605, 4294901760
    %607 = vmatpush1.msra.mxu0 %v606
    %608 = vmatprep.subr.mxu0 0.0
    %v609 = vand.u32 %v68, 4294901760
    %v610 = vsub.f32 %v68, %v609
    %v611 = vand.u32 %v610, 4294901760
    %612 = vmatpush1.msra.mxu0 %v611
    %613 = vmatprep.subr.mxu0 0.0
    %v614 = vand.u32 %v67, 4294901760
    %v615 = vsub.f32 %v67, %v614
    %v616 = vand.u32 %v615, 4294901760
    %617 = vmatpush1.msra.mxu0 %v616
    %618 = vmatprep.subr.mxu0 0.0
    %v619 = vand.u32 %v66, 4294901760
    %v620 = vsub.f32 %v66, %v619
    %v621 = vand.u32 %v620, 4294901760
    %622 = vmatpush1.msra.mxu0 %v621
    %623 = vmatprep.subr.mxu0 0.0
    %v624 = vand.u32 %v65, 4294901760
    %v625 = vsub.f32 %v65, %v624
    %v626 = vand.u32 %v625, 4294901760
    %627 = vmatpush1.msra.mxu0 %v626
    %628 = vmatprep.subr.mxu0 0.0
    %v629 = vand.u32 %v64, 4294901760
    %v630 = vsub.f32 %v64, %v629
    %v631 = vand.u32 %v630, 4294901760
    %632 = vmatpush1.msra.mxu0 %v631
    %633 = vmatprep.subr.mxu0 0.0
    %634 = vmatpush2.msra.mxu0 0.0
    %635 = vmatprep.subr.mxu0 0.0
    %636 = vmatpush2.msra.mxu0 0.0
    %637 = vmatprep.subr.mxu0 0.0
    %638 = vmatpush2.msra.mxu0 0.0
    %639 = vmatprep.subr.mxu0 0.0
    %640 = vmatpush2.msra.mxu0 0.0
    %641 = vmatprep.subr.mxu0 0.0
    %642 = vmatpush2.msra.mxu0 0.0
    %643 = vmatprep.subr.mxu0 0.0
    %644 = vmatpush2.msra.mxu0 0.0
    %645 = vmatprep.subr.mxu0 0.0
    %646 = vmatpush2.msra.mxu0 0.0
    %647 = vmatprep.subr.mxu0 0.0
    %648 = vmatpush2.msra.mxu0 0.0
    %649 = vmatprep.subr.mxu0 0.0
    %650 = vmatpush2.msra.mxu0 0.0
    %651 = vmatprep.subr.mxu0 0.0
    %652 = vmatpush2.msra.mxu0 0.0
    %653 = vmatprep.subr.mxu0 0.0
    %654 = vmatpush2.msra.mxu0 0.0
    %655 = vmatprep.subr.mxu0 0.0
    %656 = vmatpush2.msra.mxu0 0.0
    %657 = vmatprep.subr.mxu0 0.0
    %658 = vmatpush2.msra.mxu0 0.0
    %659 = vmatprep.subr.mxu0 0.0
    %660 = vmatpush2.msra.mxu0 0.0
    %661 = vmatprep.subr.mxu0 0.0
    %662 = vmatpush2.msra.mxu0 0.0
    %663 = vmatprep.subr.mxu0 0.0
    %664 = vmatpush2.msra.mxu0 0.0
    %665 = vmatprep.mubr.f32.mxu0 0.0
    %v666 = vand.u32 %v62, 4294901760
    %667 = vmatmul.mubr.f32.gmra.mxu0 %v666
    %v668 = vpop.f32.mrf.mxu0
    %v669 = vadd.f32 %v542, %v668
    %v670 = vpop.f32.mrf.mxu0
    %671 = vmatprep.mubr.f32.mxu0 0.0
    %v672 = vand.u32 %v63, 4294901760
    %673 = vmatmul.mubr.f32.gmra.mxu0 %v672
    %v674 = vpop.f32.mrf.mxu0
    %v675 = vadd.f32 %v550, %v674
    %v676 = vpop.f32.mrf.mxu0
    %677 = vdwg.mxu0
    %678 = vmatprep.subr.mxu0 0.0
    %v679 = vand.u32 %v79, 4294901760
    %680 = vmatpush1.msra.mxu0 %v679
    %681 = vmatprep.subr.mxu0 0.0
    %v682 = vand.u32 %v78, 4294901760
    %683 = vmatpush1.msra.mxu0 %v682
    %684 = vmatprep.subr.mxu0 0.0
    %v685 = vand.u32 %v77, 4294901760
    %686 = vmatpush1.msra.mxu0 %v685
    %687 = vmatprep.subr.mxu0 0.0
    %v688 = vand.u32 %v76, 4294901760
    %689 = vmatpush1.msra.mxu0 %v688
    %690 = vmatprep.subr.mxu0 0.0
    %v691 = vand.u32 %v75, 4294901760
    %692 = vmatpush1.msra.mxu0 %v691
    %693 = vmatprep.subr.mxu0 0.0
    %v694 = vand.u32 %v74, 4294901760
    %695 = vmatpush1.msra.mxu0 %v694
    %696 = vmatprep.subr.mxu0 0.0
    %v697 = vand.u32 %v73, 4294901760
    %698 = vmatpush1.msra.mxu0 %v697
    %699 = vmatprep.subr.mxu0 0.0
    %v700 = vand.u32 %v72, 4294901760
    %701 = vmatpush1.msra.mxu0 %v700
    %702 = vmatprep.subr.mxu0 0.0
    %v703 = vand.u32 %v71, 4294901760
    %704 = vmatpush1.msra.mxu0 %v703
    %705 = vmatprep.subr.mxu0 0.0
    %v706 = vand.u32 %v70, 4294901760
    %707 = vmatpush1.msra.mxu0 %v706
    %708 = vmatprep.subr.mxu0 0.0
    %v709 = vand.u32 %v69, 4294901760
    %710 = vmatpush1.msra.mxu0 %v709
    %711 = vmatprep.subr.mxu0 0.0
    %v712 = vand.u32 %v68, 4294901760
    %713 = vmatpush1.msra.mxu0 %v712
    %714 = vmatprep.subr.mxu0 0.0
    %v715 = vand.u32 %v67, 4294901760
    %716 = vmatpush1.msra.mxu0 %v715
    %717 = vmatprep.subr.mxu0 0.0
    %v718 = vand.u32 %v66, 4294901760
    %719 = vmatpush1.msra.mxu0 %v718
    %720 = vmatprep.subr.mxu0 0.0
    %v721 = vand.u32 %v65, 4294901760
    %722 = vmatpush1.msra.mxu0 %v721
    %723 = vmatprep.subr.mxu0 0.0
    %v724 = vand.u32 %v64, 4294901760
    %725 = vmatpush1.msra.mxu0 %v724
    %726 = vmatprep.subr.mxu0 0.0
    %727 = vmatpush2.msra.mxu0 0.0
    %728 = vmatprep.subr.mxu0 0.0
    %729 = vmatpush2.msra.mxu0 0.0
    %730 = vmatprep.subr.mxu0 0.0
    %731 = vmatpush2.msra.mxu0 0.0
    %732 = vmatprep.subr.mxu0 0.0
    %733 = vmatpush2.msra.mxu0 0.0
    %734 = vmatprep.subr.mxu0 0.0
    %735 = vmatpush2.msra.mxu0 0.0
    %736 = vmatprep.subr.mxu0 0.0
    %737 = vmatpush2.msra.mxu0 0.0
    %738 = vmatprep.subr.mxu0 0.0
    %739 = vmatpush2.msra.mxu0 0.0
    %740 = vmatprep.subr.mxu0 0.0
    %741 = vmatpush2.msra.mxu0 0.0
    %742 = vmatprep.subr.mxu0 0.0
    %743 = vmatpush2.msra.mxu0 0.0
    %744 = vmatprep.subr.mxu0 0.0
    %745 = vmatpush2.msra.mxu0 0.0
    %746 = vmatprep.subr.mxu0 0.0
    %747 = vmatpush2.msra.mxu0 0.0
    %748 = vmatprep.subr.mxu0 0.0
    %749 = vmatpush2.msra.mxu0 0.0
    %750 = vmatprep.subr.mxu0 0.0
    %751 = vmatpush2.msra.mxu0 0.0
    %752 = vmatprep.subr.mxu0 0.0
    %753 = vmatpush2.msra.mxu0 0.0
    %754 = vmatprep.subr.mxu0 0.0
    %755 = vmatpush2.msra.mxu0 0.0
    %756 = vmatprep.subr.mxu0 0.0
    %757 = vmatpush2.msra.mxu0 0.0
    %758 = vmatprep.mubr.f32.mxu0 0.0
    %v759 = vand.u32 %v62, 4294901760
    %760 = vmatmul.mubr.f32.gmra.mxu0 %v759
    %v761 = vpop.f32.mrf.mxu0
    %v762 = vadd.f32 %v669, %v761
    %v763 = vpop.f32.mrf.mxu0
    %764 = vmatprep.mubr.f32.mxu0 0.0
    %v765 = vand.u32 %v63, 4294901760
    %766 = vmatmul.mubr.f32.gmra.mxu0 %v765
    %v767 = vpop.f32.mrf.mxu0
    %v768 = vadd.f32 %v675, %v767
    %v769 = vpop.f32.mrf.mxu0
    %770 = vdwg.mxu0
    %v771 = vmul.f32 %v762, 0.5
    %v772 = vmul.f32 %v768, 0.5
    %v773 = vmul.f32 %v762, 0.70710677
    %v774 = vmul.f32 %v768, 0.70710677
    %v775 = vand.u32 2147483647, %v773
    %v776 = vand.u32 2147483647, %v774
    %v777 = vmul.f32 %v775, 0.3275911
    %v778 = vmul.f32 %v776, 0.3275911
    %v779 = vadd.f32 %v777, 1.0
    %v780 = vadd.f32 %v778, 1.0
    %v781 = vrcp.pop %v779
    %v782 = vmul.f32 1.0, %v781
    %v783 = vrcp.pop %v780
    %v784 = vmul.f32 1.0, %v783
    %v785 = vmul.f32 %v782, 1.0614054
    %v786 = vmul.f32 %v784, 1.0614054
    %v787 = vadd.f32 %v785, -1.4531521
    %v788 = vadd.f32 %v786, -1.4531521
    %v789 = vmul.f32 %v787, %v782
    %v790 = vmul.f32 %v788, %v784
    %v791 = vadd.f32 %v789, 1.4214138
    %v792 = vadd.f32 %v790, 1.4214138
    %v793 = vmul.f32 %v791, %v782
    %v794 = vmul.f32 %v792, %v784
    %v795 = vadd.f32 %v793, -0.28449672
    %v796 = vadd.f32 %v794, -0.28449672
    %v797 = vmul.f32 %v795, %v782
    %v798 = vmul.f32 %v796, %v784
    %v799 = vadd.f32 %v797, 0.2548296
    %v800 = vadd.f32 %v798, 0.2548296
    %v801 = vmul.f32 %v799, %v782
    %v802 = vmul.f32 %v800, %v784
    %v803 = vsub.f32 0.0, %v775
    %v804 = vsub.f32 0.0, %v776
    %v805 = vmul.f32 %v803, %v775
    %v806 = vmul.f32 %v804, %v776
    %v807 = vmul.f32 %v805, 1.442695
    %v808 = vpow.pop %v807
    %v809 = vmul.f32 %v806, 1.442695
    %v810 = vpow.pop %v809
    %v811 = vmul.f32 %v801, %v808
    %v812 = vmul.f32 %v802, %v810
    %v813 = vsub.f32 1.0, %v811
    %v814 = vsub.f32 1.0, %v812
    %vm815 = vcmp.ge.f32.partialorder %v773, 0.0
    %vm816 = vcmp.ge.f32.partialorder %v774, 0.0
    %v817 = vsub.f32 0.0, %v813
    %v818 = vsub.f32 0.0, %v814
    %v819 = vsel %vm815, %v813, %v817
    %v820 = vsel %vm816, %v814, %v818
    %v821 = vadd.f32 %v819, 1.0
    %v822 = vadd.f32 %v820, 1.0
    %v823 = vmul.f32 %v771, %v821
    %v824 = vmul.f32 %v772, %v822
    %v825 = vld [vmem:[#allocation7] sm:$0xff]
    %v826 = vld [vmem:[#allocation7 + $0x8] sm:$0xff]
    %v827 = vld [vmem:[#allocation7 + $0x10] sm:$0xff]
    %v828 = vld [vmem:[#allocation7 + $0x18] sm:$0xff]
    %v829 = vld [vmem:[#allocation7 + $0x20] sm:$0xff]
    %v830 = vld [vmem:[#allocation7 + $0x28] sm:$0xff]
    %v831 = vld [vmem:[#allocation7 + $0x30] sm:$0xff]
    %v832 = vld [vmem:[#allocation7 + $0x38] sm:$0xff]
    %v833 = vld [vmem:[#allocation7 + $0x40] sm:$0xff]
    %v834 = vld [vmem:[#allocation7 + $0x48] sm:$0xff]
    %v835 = vld [vmem:[#allocation7 + $0x50] sm:$0xff]
    %v836 = vld [vmem:[#allocation7 + $0x58] sm:$0xff]
    %v837 = vld [vmem:[#allocation7 + $0x60] sm:$0xff]
    %v838 = vld [vmem:[#allocation7 + $0x68] sm:$0xff]
    %v839 = vld [vmem:[#allocation7 + $0x70] sm:$0xff]
    %v840 = vld [vmem:[#allocation7 + $0x78] sm:$0xff]
    %v841 = vld [vmem:[%s4] sm:$0x1]
    %v843 = vlaneseq
    %v844 = vshrl.u32 %v843, 7
    %v845 = vsub.s32 0, %v844
    %v846 = vrot.slane %v841, %v845
    %848 = vmatprep.subr.mxu0 0.0
    %v849 = vand.u32 %v840, 4294901760
    %850 = vmatpush1.msra.mxu0 %v849
    %851 = vmatprep.subr.mxu0 0.0
    %v852 = vand.u32 %v839, 4294901760
    %853 = vmatpush1.msra.mxu0 %v852
    %854 = vmatprep.subr.mxu0 0.0
    %v855 = vand.u32 %v838, 4294901760
    %856 = vmatpush1.msra.mxu0 %v855
    %857 = vmatprep.subr.mxu0 0.0
    %v858 = vand.u32 %v837, 4294901760
    %859 = vmatpush1.msra.mxu0 %v858
    %860 = vmatprep.subr.mxu0 0.0
    %v861 = vand.u32 %v836, 4294901760
    %862 = vmatpush1.msra.mxu0 %v861
    %863 = vmatprep.subr.mxu0 0.0
    %v864 = vand.u32 %v835, 4294901760
    %865 = vmatpush1.msra.mxu0 %v864
    %866 = vmatprep.subr.mxu0 0.0
    %v867 = vand.u32 %v834, 4294901760
    %868 = vmatpush1.msra.mxu0 %v867
    %869 = vmatprep.subr.mxu0 0.0
    %v870 = vand.u32 %v833, 4294901760
    %871 = vmatpush1.msra.mxu0 %v870
    %872 = vmatprep.subr.mxu0 0.0
    %v873 = vand.u32 %v832, 4294901760
    %874 = vmatpush1.msra.mxu0 %v873
    %875 = vmatprep.subr.mxu0 0.0
    %v876 = vand.u32 %v831, 4294901760
    %877 = vmatpush1.msra.mxu0 %v876
    %878 = vmatprep.subr.mxu0 0.0
    %v879 = vand.u32 %v830, 4294901760
    %880 = vmatpush1.msra.mxu0 %v879
    %881 = vmatprep.subr.mxu0 0.0
    %v882 = vand.u32 %v829, 4294901760
    %883 = vmatpush1.msra.mxu0 %v882
    %884 = vmatprep.subr.mxu0 0.0
    %v885 = vand.u32 %v828, 4294901760
    %886 = vmatpush1.msra.mxu0 %v885
    %887 = vmatprep.subr.mxu0 0.0
    %v888 = vand.u32 %v827, 4294901760
    %889 = vmatpush1.msra.mxu0 %v888
    %890 = vmatprep.subr.mxu0 0.0
    %v891 = vand.u32 %v826, 4294901760
    %892 = vmatpush1.msra.mxu0 %v891
    %893 = vmatprep.subr.mxu0 0.0
    %v894 = vand.u32 %v825, 4294901760
    %895 = vmatpush1.msra.mxu0 %v894
    %896 = vmatprep.subr.mxu0 0.0
    %897 = vmatpush2.msra.mxu0 0.0
    %898 = vmatprep.subr.mxu0 0.0
    %899 = vmatpush2.msra.mxu0 0.0
    %900 = vmatprep.subr.mxu0 0.0
    %901 = vmatpush2.msra.mxu0 0.0
    %902 = vmatprep.subr.mxu0 0.0
    %903 = vmatpush2.msra.mxu0 0.0
    %904 = vmatprep.subr.mxu0 0.0
    %905 = vmatpush2.msra.mxu0 0.0
    %906 = vmatprep.subr.mxu0 0.0
    %907 = vmatpush2.msra.mxu0 0.0
    %908 = vmatprep.subr.mxu0 0.0
    %909 = vmatpush2.msra.mxu0 0.0
    %910 = vmatprep.subr.mxu0 0.0
    %911 = vmatpush2.msra.mxu0 0.0
    %912 = vmatprep.subr.mxu0 0.0
    %913 = vmatpush2.msra.mxu0 0.0
    %914 = vmatprep.subr.mxu0 0.0
    %915 = vmatpush2.msra.mxu0 0.0
    %916 = vmatprep.subr.mxu0 0.0
    %917 = vmatpush2.msra.mxu0 0.0
    %918 = vmatprep.subr.mxu0 0.0
    %919 = vmatpush2.msra.mxu0 0.0
    %920 = vmatprep.subr.mxu0 0.0
    %921 = vmatpush2.msra.mxu0 0.0
    %922 = vmatprep.subr.mxu0 0.0
    %923 = vmatpush2.msra.mxu0 0.0
    %924 = vmatprep.subr.mxu0 0.0
    %925 = vmatpush2.msra.mxu0 0.0
    %926 = vmatprep.subr.mxu0 0.0
    %927 = vmatpush2.msra.mxu0 0.0
    %928 = vmatprep.mubr.f32.mxu0 0.0
    %v929 = vand.u32 %v823, 4294901760
    %v930 = vsub.f32 %v823, %v929
    %v931 = vand.u32 %v930, 4294901760
    %v932 = vsub.f32 %v930, %v931
    %v933 = vand.u32 %v932, 4294901760
    %934 = vmatmul.mubr.f32.gmra.mxu0 %v933
    %v935 = vpop.f32.mrf.mxu0
    %v936 = vadd.f32 %v846, %v935
    %v937 = vpop.f32.mrf.mxu0
    %938 = vmatprep.mubr.f32.mxu0 0.0
    %v939 = vand.u32 %v824, 4294901760
    %v940 = vsub.f32 %v824, %v939
    %v941 = vand.u32 %v940, 4294901760
    %v942 = vsub.f32 %v940, %v941
    %v943 = vand.u32 %v942, 4294901760
    %944 = vmatmul.mubr.f32.gmra.mxu0 %v943
    %v945 = vpop.f32.mrf.mxu0
    %v946 = vadd.f32 %v846, %v945
    %v947 = vpop.f32.mrf.mxu0
    %948 = vdwg.mxu0
    %949 = vmatprep.subr.mxu0 0.0
    %v950 = vand.u32 %v840, 4294901760
    %v951 = vsub.f32 %v840, %v950
    %v952 = vand.u32 %v951, 4294901760
    %v953 = vsub.f32 %v951, %v952
    %v954 = vand.u32 %v953, 4294901760
    %955 = vmatpush1.msra.mxu0 %v954
    %956 = vmatprep.subr.mxu0 0.0
    %v957 = vand.u32 %v839, 4294901760
    %v958 = vsub.f32 %v839, %v957
    %v959 = vand.u32 %v958, 4294901760
    %v960 = vsub.f32 %v958, %v959
    %v961 = vand.u32 %v960, 4294901760
    %962 = vmatpush1.msra.mxu0 %v961
    %963 = vmatprep.subr.mxu0 0.0
    %v964 = vand.u32 %v838, 4294901760
    %v965 = vsub.f32 %v838, %v964
    %v966 = vand.u32 %v965, 4294901760
    %v967 = vsub.f32 %v965, %v966
    %v968 = vand.u32 %v967, 4294901760
    %969 = vmatpush1.msra.mxu0 %v968
    %970 = vmatprep.subr.mxu0 0.0
    %v971 = vand.u32 %v837, 4294901760
    %v972 = vsub.f32 %v837, %v971
    %v973 = vand.u32 %v972, 4294901760
    %v974 = vsub.f32 %v972, %v973
    %v975 = vand.u32 %v974, 4294901760
    %976 = vmatpush1.msra.mxu0 %v975
    %977 = vmatprep.subr.mxu0 0.0
    %v978 = vand.u32 %v836, 4294901760
    %v979 = vsub.f32 %v836, %v978
    %v980 = vand.u32 %v979, 4294901760
    %v981 = vsub.f32 %v979, %v980
    %v982 = vand.u32 %v981, 4294901760
    %983 = vmatpush1.msra.mxu0 %v982
    %984 = vmatprep.subr.mxu0 0.0
    %v985 = vand.u32 %v835, 4294901760
    %v986 = vsub.f32 %v835, %v985
    %v987 = vand.u32 %v986, 4294901760
    %v988 = vsub.f32 %v986, %v987
    %v989 = vand.u32 %v988, 4294901760
    %990 = vmatpush1.msra.mxu0 %v989
    %991 = vmatprep.subr.mxu0 0.0
    %v992 = vand.u32 %v834, 4294901760
    %v993 = vsub.f32 %v834, %v992
    %v994 = vand.u32 %v993, 4294901760
    %v995 = vsub.f32 %v993, %v994
    %v996 = vand.u32 %v995, 4294901760
    %997 = vmatpush1.msra.mxu0 %v996
    %998 = vmatprep.subr.mxu0 0.0
    %v999 = vand.u32 %v833, 4294901760
    %v1000 = vsub.f32 %v833, %v999
    %v1001 = vand.u32 %v1000, 4294901760
    %v1002 = vsub.f32 %v1000, %v1001
    %v1003 = vand.u32 %v1002, 4294901760
    %1004 = vmatpush1.msra.mxu0 %v1003
    %1005 = vmatprep.subr.mxu0 0.0
    %v1006 = vand.u32 %v832, 4294901760
    %v1007 = vsub.f32 %v832, %v1006
    %v1008 = vand.u32 %v1007, 4294901760
    %v1009 = vsub.f32 %v1007, %v1008
    %v1010 = vand.u32 %v1009, 4294901760
    %1011 = vmatpush1.msra.mxu0 %v1010
    %1012 = vmatprep.subr.mxu0 0.0
    %v1013 = vand.u32 %v831, 4294901760
    %v1014 = vsub.f32 %v831, %v1013
    %v1015 = vand.u32 %v1014, 4294901760
    %v1016 = vsub.f32 %v1014, %v1015
    %v1017 = vand.u32 %v1016, 4294901760
    %1018 = vmatpush1.msra.mxu0 %v1017
    %1019 = vmatprep.subr.mxu0 0.0
    %v1020 = vand.u32 %v830, 4294901760
    %v1021 = vsub.f32 %v830, %v1020
    %v1022 = vand.u32 %v1021, 4294901760
    %v1023 = vsub.f32 %v1021, %v1022
    %v1024 = vand.u32 %v1023, 4294901760
    %1025 = vmatpush1.msra.mxu0 %v1024
    %1026 = vmatprep.subr.mxu0 0.0
    %v1027 = vand.u32 %v829, 4294901760
    %v1028 = vsub.f32 %v829, %v1027
    %v1029 = vand.u32 %v1028, 4294901760
    %v1030 = vsub.f32 %v1028, %v1029
    %v1031 = vand.u32 %v1030, 4294901760
    %1032 = vmatpush1.msra.mxu0 %v1031
    %1033 = vmatprep.subr.mxu0 0.0
    %v1034 = vand.u32 %v828, 4294901760
    %v1035 = vsub.f32 %v828, %v1034
    %v1036 = vand.u32 %v1035, 4294901760
    %v1037 = vsub.f32 %v1035, %v1036
    %v1038 = vand.u32 %v1037, 4294901760
    %1039 = vmatpush1.msra.mxu0 %v1038
    %1040 = vmatprep.subr.mxu0 0.0
    %v1041 = vand.u32 %v827, 4294901760
    %v1042 = vsub.f32 %v827, %v1041
    %v1043 = vand.u32 %v1042, 4294901760
    %v1044 = vsub.f32 %v1042, %v1043
    %v1045 = vand.u32 %v1044, 4294901760
    %1046 = vmatpush1.msra.mxu0 %v1045
    %1047 = vmatprep.subr.mxu0 0.0
    %v1048 = vand.u32 %v826, 4294901760
    %v1049 = vsub.f32 %v826, %v1048
    %v1050 = vand.u32 %v1049, 4294901760
    %v1051 = vsub.f32 %v1049, %v1050
    %v1052 = vand.u32 %v1051, 4294901760
    %1053 = vmatpush1.msra.mxu0 %v1052
    %1054 = vmatprep.subr.mxu0 0.0
    %v1055 = vand.u32 %v825, 4294901760
    %v1056 = vsub.f32 %v825, %v1055
    %v1057 = vand.u32 %v1056, 4294901760
    %v1058 = vsub.f32 %v1056, %v1057
    %v1059 = vand.u32 %v1058, 4294901760
    %1060 = vmatpush1.msra.mxu0 %v1059
    %1061 = vmatprep.subr.mxu0 0.0
    %1062 = vmatpush2.msra.mxu0 0.0
    %1063 = vmatprep.subr.mxu0 0.0
    %1064 = vmatpush2.msra.mxu0 0.0
    %1065 = vmatprep.subr.mxu0 0.0
    %1066 = vmatpush2.msra.mxu0 0.0
    %1067 = vmatprep.subr.mxu0 0.0
    %1068 = vmatpush2.msra.mxu0 0.0
    %1069 = vmatprep.subr.mxu0 0.0
    %1070 = vmatpush2.msra.mxu0 0.0
    %1071 = vmatprep.subr.mxu0 0.0
    %1072 = vmatpush2.msra.mxu0 0.0
    %1073 = vmatprep.subr.mxu0 0.0
    %1074 = vmatpush2.msra.mxu0 0.0
    %1075 = vmatprep.subr.mxu0 0.0
    %1076 = vmatpush2.msra.mxu0 0.0
    %1077 = vmatprep.subr.mxu0 0.0
    %1078 = vmatpush2.msra.mxu0 0.0
    %1079 = vmatprep.subr.mxu0 0.0
    %1080 = vmatpush2.msra.mxu0 0.0
    %1081 = vmatprep.subr.mxu0 0.0
    %1082 = vmatpush2.msra.mxu0 0.0
    %1083 = vmatprep.subr.mxu0 0.0
    %1084 = vmatpush2.msra.mxu0 0.0
    %1085 = vmatprep.subr.mxu0 0.0
    %1086 = vmatpush2.msra.mxu0 0.0
    %1087 = vmatprep.subr.mxu0 0.0
    %1088 = vmatpush2.msra.mxu0 0.0
    %1089 = vmatprep.subr.mxu0 0.0
    %1090 = vmatpush2.msra.mxu0 0.0
    %1091 = vmatprep.subr.mxu0 0.0
    %1092 = vmatpush2.msra.mxu0 0.0
    %1093 = vmatprep.mubr.f32.mxu0 0.0
    %v1094 = vand.u32 %v823, 4294901760
    %1095 = vmatmul.mubr.f32.gmra.mxu0 %v1094
    %v1096 = vpop.f32.mrf.mxu0
    %v1097 = vadd.f32 %v936, %v1096
    %v1098 = vpop.f32.mrf.mxu0
    %1099 = vmatprep.mubr.f32.mxu0 0.0
    %v1100 = vand.u32 %v824, 4294901760
    %1101 = vmatmul.mubr.f32.gmra.mxu0 %v1100
    %v1102 = vpop.f32.mrf.mxu0
    %v1103 = vadd.f32 %v946, %v1102
    %v1104 = vpop.f32.mrf.mxu0
    %1105 = vdwg.mxu0
    %1106 = vmatprep.subr.mxu0 0.0
    %v1107 = vand.u32 %v840, 4294901760
    %v1108 = vsub.f32 %v840, %v1107
    %1109 = vmatpush1.msra.mxu0 %v1108
    %1110 = vmatprep.subr.mxu0 0.0
    %v1111 = vand.u32 %v839, 4294901760
    %v1112 = vsub.f32 %v839, %v1111
    %1113 = vmatpush1.msra.mxu0 %v1112
    %1114 = vmatprep.subr.mxu0 0.0
    %v1115 = vand.u32 %v838, 4294901760
    %v1116 = vsub.f32 %v838, %v1115
    %1117 = vmatpush1.msra.mxu0 %v1116
    %1118 = vmatprep.subr.mxu0 0.0
    %v1119 = vand.u32 %v837, 4294901760
    %v1120 = vsub.f32 %v837, %v1119
    %1121 = vmatpush1.msra.mxu0 %v1120
    %1122 = vmatprep.subr.mxu0 0.0
    %v1123 = vand.u32 %v836, 4294901760
    %v1124 = vsub.f32 %v836, %v1123
    %1125 = vmatpush1.msra.mxu0 %v1124
    %1126 = vmatprep.subr.mxu0 0.0
    %v1127 = vand.u32 %v835, 4294901760
    %v1128 = vsub.f32 %v835, %v1127
    %1129 = vmatpush1.msra.mxu0 %v1128
    %1130 = vmatprep.subr.mxu0 0.0
    %v1131 = vand.u32 %v834, 4294901760
    %v1132 = vsub.f32 %v834, %v1131
    %1133 = vmatpush1.msra.mxu0 %v1132
    %1134 = vmatprep.subr.mxu0 0.0
    %v1135 = vand.u32 %v833, 4294901760
    %v1136 = vsub.f32 %v833, %v1135
    %1137 = vmatpush1.msra.mxu0 %v1136
    %1138 = vmatprep.subr.mxu0 0.0
    %v1139 = vand.u32 %v832, 4294901760
    %v1140 = vsub.f32 %v832, %v1139
    %1141 = vmatpush1.msra.mxu0 %v1140
    %1142 = vmatprep.subr.mxu0 0.0
    %v1143 = vand.u32 %v831, 4294901760
    %v1144 = vsub.f32 %v831, %v1143
    %1145 = vmatpush1.msra.mxu0 %v1144
    %1146 = vmatprep.subr.mxu0 0.0
    %v1147 = vand.u32 %v830, 4294901760
    %v1148 = vsub.f32 %v830, %v1147
    %1149 = vmatpush1.msra.mxu0 %v1148
    %1150 = vmatprep.subr.mxu0 0.0
    %v1151 = vand.u32 %v829, 4294901760
    %v1152 = vsub.f32 %v829, %v1151
    %1153 = vmatpush1.msra.mxu0 %v1152
    %1154 = vmatprep.subr.mxu0 0.0
    %v1155 = vand.u32 %v828, 4294901760
    %v1156 = vsub.f32 %v828, %v1155
    %1157 = vmatpush1.msra.mxu0 %v1156
    %1158 = vmatprep.subr.mxu0 0.0
    %v1159 = vand.u32 %v827, 4294901760
    %v1160 = vsub.f32 %v827, %v1159
    %1161 = vmatpush1.msra.mxu0 %v1160
    %1162 = vmatprep.subr.mxu0 0.0
    %v1163 = vand.u32 %v826, 4294901760
    %v1164 = vsub.f32 %v826, %v1163
    %1165 = vmatpush1.msra.mxu0 %v1164
    %1166 = vmatprep.subr.mxu0 0.0
    %v1167 = vand.u32 %v825, 4294901760
    %v1168 = vsub.f32 %v825, %v1167
    %1169 = vmatpush1.msra.mxu0 %v1168
    %1170 = vmatprep.subr.mxu0 0.0
    %1171 = vmatpush2.msra.mxu0 0.0
    %1172 = vmatprep.subr.mxu0 0.0
    %1173 = vmatpush2.msra.mxu0 0.0
    %1174 = vmatprep.subr.mxu0 0.0
    %1175 = vmatpush2.msra.mxu0 0.0
    %1176 = vmatprep.subr.mxu0 0.0
    %1177 = vmatpush2.msra.mxu0 0.0
    %1178 = vmatprep.subr.mxu0 0.0
    %1179 = vmatpush2.msra.mxu0 0.0
    %1180 = vmatprep.subr.mxu0 0.0
    %1181 = vmatpush2.msra.mxu0 0.0
    %1182 = vmatprep.subr.mxu0 0.0
    %1183 = vmatpush2.msra.mxu0 0.0
    %1184 = vmatprep.subr.mxu0 0.0
    %1185 = vmatpush2.msra.mxu0 0.0
    %1186 = vmatprep.subr.mxu0 0.0
    %1187 = vmatpush2.msra.mxu0 0.0
    %1188 = vmatprep.subr.mxu0 0.0
    %1189 = vmatpush2.msra.mxu0 0.0
    %1190 = vmatprep.subr.mxu0 0.0
    %1191 = vmatpush2.msra.mxu0 0.0
    %1192 = vmatprep.subr.mxu0 0.0
    %1193 = vmatpush2.msra.mxu0 0.0
    %1194 = vmatprep.subr.mxu0 0.0
    %1195 = vmatpush2.msra.mxu0 0.0
    %1196 = vmatprep.subr.mxu0 0.0
    %1197 = vmatpush2.msra.mxu0 0.0
    %1198 = vmatprep.subr.mxu0 0.0
    %1199 = vmatpush2.msra.mxu0 0.0
    %1200 = vmatprep.subr.mxu0 0.0
    %1201 = vmatpush2.msra.mxu0 0.0
    %1202 = vmatprep.mubr.f32.mxu0 0.0
    %v1203 = vand.u32 %v823, 4294901760
    %v1204 = vsub.f32 %v823, %v1203
    %1205 = vmatmul.mubr.f32.gmra.mxu0 %v1204
    %v1206 = vpop.f32.mrf.mxu0
    %v1207 = vadd.f32 %v1097, %v1206
    %v1208 = vpop.f32.mrf.mxu0
    %1209 = vmatprep.mubr.f32.mxu0 0.0
    %v1210 = vand.u32 %v824, 4294901760
    %v1211 = vsub.f32 %v824, %v1210
    %1212 = vmatmul.mubr.f32.gmra.mxu0 %v1211
    %v1213 = vpop.f32.mrf.mxu0
    %v1214 = vadd.f32 %v1103, %v1213
    %v1215 = vpop.f32.mrf.mxu0
    %1216 = vdwg.mxu0
    %1217 = vmatprep.subr.mxu0 0.0
    %v1218 = vand.u32 %v840, 4294901760
    %1219 = vmatpush1.msra.mxu0 %v1218
    %1220 = vmatprep.subr.mxu0 0.0
    %v1221 = vand.u32 %v839, 4294901760
    %1222 = vmatpush1.msra.mxu0 %v1221
    %1223 = vmatprep.subr.mxu0 0.0
    %v1224 = vand.u32 %v838, 4294901760
    %1225 = vmatpush1.msra.mxu0 %v1224
    %1226 = vmatprep.subr.mxu0 0.0
    %v1227 = vand.u32 %v837, 4294901760
    %1228 = vmatpush1.msra.mxu0 %v1227
    %1229 = vmatprep.subr.mxu0 0.0
    %v1230 = vand.u32 %v836, 4294901760
    %1231 = vmatpush1.msra.mxu0 %v1230
    %1232 = vmatprep.subr.mxu0 0.0
    %v1233 = vand.u32 %v835, 4294901760
    %1234 = vmatpush1.msra.mxu0 %v1233
    %1235 = vmatprep.subr.mxu0 0.0
    %v1236 = vand.u32 %v834, 4294901760
    %1237 = vmatpush1.msra.mxu0 %v1236
    %1238 = vmatprep.subr.mxu0 0.0
    %v1239 = vand.u32 %v833, 4294901760
    %1240 = vmatpush1.msra.mxu0 %v1239
    %1241 = vmatprep.subr.mxu0 0.0
    %v1242 = vand.u32 %v832, 4294901760
    %1243 = vmatpush1.msra.mxu0 %v1242
    %1244 = vmatprep.subr.mxu0 0.0
    %v1245 = vand.u32 %v831, 4294901760
    %1246 = vmatpush1.msra.mxu0 %v1245
    %1247 = vmatprep.subr.mxu0 0.0
    %v1248 = vand.u32 %v830, 4294901760
    %1249 = vmatpush1.msra.mxu0 %v1248
    %1250 = vmatprep.subr.mxu0 0.0
    %v1251 = vand.u32 %v829, 4294901760
    %1252 = vmatpush1.msra.mxu0 %v1251
    %1253 = vmatprep.subr.mxu0 0.0
    %v1254 = vand.u32 %v828, 4294901760
    %1255 = vmatpush1.msra.mxu0 %v1254
    %1256 = vmatprep.subr.mxu0 0.0
    %v1257 = vand.u32 %v827, 4294901760
    %1258 = vmatpush1.msra.mxu0 %v1257
    %1259 = vmatprep.subr.mxu0 0.0
    %v1260 = vand.u32 %v826, 4294901760
    %1261 = vmatpush1.msra.mxu0 %v1260
    %1262 = vmatprep.subr.mxu0 0.0
    %v1263 = vand.u32 %v825, 4294901760
    %1264 = vmatpush1.msra.mxu0 %v1263
    %1265 = vmatprep.subr.mxu0 0.0
    %1266 = vmatpush2.msra.mxu0 0.0
    %1267 = vmatprep.subr.mxu0 0.0
    %1268 = vmatpush2.msra.mxu0 0.0
    %1269 = vmatprep.subr.mxu0 0.0
    %1270 = vmatpush2.msra.mxu0 0.0
    %1271 = vmatprep.subr.mxu0 0.0
    %1272 = vmatpush2.msra.mxu0 0.0
    %1273 = vmatprep.subr.mxu0 0.0
    %1274 = vmatpush2.msra.mxu0 0.0
    %1275 = vmatprep.subr.mxu0 0.0
    %1276 = vmatpush2.msra.mxu0 0.0
    %1277 = vmatprep.subr.mxu0 0.0
    %1278 = vmatpush2.msra.mxu0 0.0
    %1279 = vmatprep.subr.mxu0 0.0
    %1280 = vmatpush2.msra.mxu0 0.0
    %1281 = vmatprep.subr.mxu0 0.0
    %1282 = vmatpush2.msra.mxu0 0.0
    %1283 = vmatprep.subr.mxu0 0.0
    %1284 = vmatpush2.msra.mxu0 0.0
    %1285 = vmatprep.subr.mxu0 0.0
    %1286 = vmatpush2.msra.mxu0 0.0
    %1287 = vmatprep.subr.mxu0 0.0
    %1288 = vmatpush2.msra.mxu0 0.0
    %1289 = vmatprep.subr.mxu0 0.0
    %1290 = vmatpush2.msra.mxu0 0.0
    %1291 = vmatprep.subr.mxu0 0.0
    %1292 = vmatpush2.msra.mxu0 0.0
    %1293 = vmatprep.subr.mxu0 0.0
    %1294 = vmatpush2.msra.mxu0 0.0
    %1295 = vmatprep.subr.mxu0 0.0
    %1296 = vmatpush2.msra.mxu0 0.0
    %1297 = vmatprep.mubr.f32.mxu0 0.0
    %v1298 = vand.u32 %v823, 4294901760
    %v1299 = vsub.f32 %v823, %v1298
    %v1300 = vand.u32 %v1299, 4294901760
    %1301 = vmatmul.mubr.f32.gmra.mxu0 %v1300
    %v1302 = vpop.f32.mrf.mxu0
    %v1303 = vadd.f32 %v1207, %v1302
    %v1304 = vpop.f32.mrf.mxu0
    %1305 = vmatprep.mubr.f32.mxu0 0.0
    %v1306 = vand.u32 %v824, 4294901760
    %v1307 = vsub.f32 %v824, %v1306
    %v1308 = vand.u32 %v1307, 4294901760
    %1309 = vmatmul.mubr.f32.gmra.mxu0 %v1308
    %v1310 = vpop.f32.mrf.mxu0
    %v1311 = vadd.f32 %v1214, %v1310
    %v1312 = vpop.f32.mrf.mxu0
    %1313 = vdwg.mxu0
    %1314 = vmatprep.subr.mxu0 0.0
    %v1315 = vand.u32 %v840, 4294901760
    %v1316 = vsub.f32 %v840, %v1315
    %v1317 = vand.u32 %v1316, 4294901760
    %1318 = vmatpush1.msra.mxu0 %v1317
    %1319 = vmatprep.subr.mxu0 0.0
    %v1320 = vand.u32 %v839, 4294901760
    %v1321 = vsub.f32 %v839, %v1320
    %v1322 = vand.u32 %v1321, 4294901760
    %1323 = vmatpush1.msra.mxu0 %v1322
    %1324 = vmatprep.subr.mxu0 0.0
    %v1325 = vand.u32 %v838, 4294901760
    %v1326 = vsub.f32 %v838, %v1325
    %v1327 = vand.u32 %v1326, 4294901760
    %1328 = vmatpush1.msra.mxu0 %v1327
    %1329 = vmatprep.subr.mxu0 0.0
    %v1330 = vand.u32 %v837, 4294901760
    %v1331 = vsub.f32 %v837, %v1330
    %v1332 = vand.u32 %v1331, 4294901760
    %1333 = vmatpush1.msra.mxu0 %v1332
    %1334 = vmatprep.subr.mxu0 0.0
    %v1335 = vand.u32 %v836, 4294901760
    %v1336 = vsub.f32 %v836, %v1335
    %v1337 = vand.u32 %v1336, 4294901760
    %1338 = vmatpush1.msra.mxu0 %v1337
    %1339 = vmatprep.subr.mxu0 0.0
    %v1340 = vand.u32 %v835, 4294901760
    %v1341 = vsub.f32 %v835, %v1340
    %v1342 = vand.u32 %v1341, 4294901760
    %1343 = vmatpush1.msra.mxu0 %v1342
    %1344 = vmatprep.subr.mxu0 0.0
    %v1345 = vand.u32 %v834, 4294901760
    %v1346 = vsub.f32 %v834, %v1345
    %v1347 = vand.u32 %v1346, 4294901760
    %1348 = vmatpush1.msra.mxu0 %v1347
    %1349 = vmatprep.subr.mxu0 0.0
    %v1350 = vand.u32 %v833, 4294901760
    %v1351 = vsub.f32 %v833, %v1350
    %v1352 = vand.u32 %v1351, 4294901760
    %1353 = vmatpush1.msra.mxu0 %v1352
    %1354 = vmatprep.subr.mxu0 0.0
    %v1355 = vand.u32 %v832, 4294901760
    %v1356 = vsub.f32 %v832, %v1355
    %v1357 = vand.u32 %v1356, 4294901760
    %1358 = vmatpush1.msra.mxu0 %v1357
    %1359 = vmatprep.subr.mxu0 0.0
    %v1360 = vand.u32 %v831, 4294901760
    %v1361 = vsub.f32 %v831, %v1360
    %v1362 = vand.u32 %v1361, 4294901760
    %1363 = vmatpush1.msra.mxu0 %v1362
    %1364 = vmatprep.subr.mxu0 0.0
    %v1365 = vand.u32 %v830, 4294901760
    %v1366 = vsub.f32 %v830, %v1365
    %v1367 = vand.u32 %v1366, 4294901760
    %1368 = vmatpush1.msra.mxu0 %v1367
    %1369 = vmatprep.subr.mxu0 0.0
    %v1370 = vand.u32 %v829, 4294901760
    %v1371 = vsub.f32 %v829, %v1370
    %v1372 = vand.u32 %v1371, 4294901760
    %1373 = vmatpush1.msra.mxu0 %v1372
    %1374 = vmatprep.subr.mxu0 0.0
    %v1375 = vand.u32 %v828, 4294901760
    %v1376 = vsub.f32 %v828, %v1375
    %v1377 = vand.u32 %v1376, 4294901760
    %1378 = vmatpush1.msra.mxu0 %v1377
    %1379 = vmatprep.subr.mxu0 0.0
    %v1380 = vand.u32 %v827, 4294901760
    %v1381 = vsub.f32 %v827, %v1380
    %v1382 = vand.u32 %v1381, 4294901760
    %1383 = vmatpush1.msra.mxu0 %v1382
    %1384 = vmatprep.subr.mxu0 0.0
    %v1385 = vand.u32 %v826, 4294901760
    %v1386 = vsub.f32 %v826, %v1385
    %v1387 = vand.u32 %v1386, 4294901760
    %1388 = vmatpush1.msra.mxu0 %v1387
    %1389 = vmatprep.subr.mxu0 0.0
    %v1390 = vand.u32 %v825, 4294901760
    %v1391 = vsub.f32 %v825, %v1390
    %v1392 = vand.u32 %v1391, 4294901760
    %1393 = vmatpush1.msra.mxu0 %v1392
    %1394 = vmatprep.subr.mxu0 0.0
    %1395 = vmatpush2.msra.mxu0 0.0
    %1396 = vmatprep.subr.mxu0 0.0
    %1397 = vmatpush2.msra.mxu0 0.0
    %1398 = vmatprep.subr.mxu0 0.0
    %1399 = vmatpush2.msra.mxu0 0.0
    %1400 = vmatprep.subr.mxu0 0.0
    %1401 = vmatpush2.msra.mxu0 0.0
    %1402 = vmatprep.subr.mxu0 0.0
    %1403 = vmatpush2.msra.mxu0 0.0
    %1404 = vmatprep.subr.mxu0 0.0
    %1405 = vmatpush2.msra.mxu0 0.0
    %1406 = vmatprep.subr.mxu0 0.0
    %1407 = vmatpush2.msra.mxu0 0.0
    %1408 = vmatprep.subr.mxu0 0.0
    %1409 = vmatpush2.msra.mxu0 0.0
    %1410 = vmatprep.subr.mxu0 0.0
    %1411 = vmatpush2.msra.mxu0 0.0
    %1412 = vmatprep.subr.mxu0 0.0
    %1413 = vmatpush2.msra.mxu0 0.0
    %1414 = vmatprep.subr.mxu0 0.0
    %1415 = vmatpush2.msra.mxu0 0.0
    %1416 = vmatprep.subr.mxu0 0.0
    %1417 = vmatpush2.msra.mxu0 0.0
    %1418 = vmatprep.subr.mxu0 0.0
    %1419 = vmatpush2.msra.mxu0 0.0
    %1420 = vmatprep.subr.mxu0 0.0
    %1421 = vmatpush2.msra.mxu0 0.0
    %1422 = vmatprep.subr.mxu0 0.0
    %1423 = vmatpush2.msra.mxu0 0.0
    %1424 = vmatprep.subr.mxu0 0.0
    %1425 = vmatpush2.msra.mxu0 0.0
    %1426 = vmatprep.mubr.f32.mxu0 0.0
    %v1427 = vand.u32 %v823, 4294901760
    %1428 = vmatmul.mubr.f32.gmra.mxu0 %v1427
    %v1429 = vpop.f32.mrf.mxu0
    %v1430 = vadd.f32 %v1303, %v1429
    %v1431 = vpop.f32.mrf.mxu0
    %1432 = vmatprep.mubr.f32.mxu0 0.0
    %v1433 = vand.u32 %v824, 4294901760
    %1434 = vmatmul.mubr.f32.gmra.mxu0 %v1433
    %v1435 = vpop.f32.mrf.mxu0
    %v1436 = vadd.f32 %v1311, %v1435
    %v1437 = vpop.f32.mrf.mxu0
    %1438 = vdwg.mxu0
    %1439 = vmatprep.subr.mxu0 0.0
    %v1440 = vand.u32 %v840, 4294901760
    %1441 = vmatpush1.msra.mxu0 %v1440
    %1442 = vmatprep.subr.mxu0 0.0
    %v1443 = vand.u32 %v839, 4294901760
    %1444 = vmatpush1.msra.mxu0 %v1443
    %1445 = vmatprep.subr.mxu0 0.0
    %v1446 = vand.u32 %v838, 4294901760
    %1447 = vmatpush1.msra.mxu0 %v1446
    %1448 = vmatprep.subr.mxu0 0.0
    %v1449 = vand.u32 %v837, 4294901760
    %1450 = vmatpush1.msra.mxu0 %v1449
    %1451 = vmatprep.subr.mxu0 0.0
    %v1452 = vand.u32 %v836, 4294901760
    %1453 = vmatpush1.msra.mxu0 %v1452
    %1454 = vmatprep.subr.mxu0 0.0
    %v1455 = vand.u32 %v835, 4294901760
    %1456 = vmatpush1.msra.mxu0 %v1455
    %1457 = vmatprep.subr.mxu0 0.0
    %v1458 = vand.u32 %v834, 4294901760
    %1459 = vmatpush1.msra.mxu0 %v1458
    %1460 = vmatprep.subr.mxu0 0.0
    %v1461 = vand.u32 %v833, 4294901760
    %1462 = vmatpush1.msra.mxu0 %v1461
    %1463 = vmatprep.subr.mxu0 0.0
    %v1464 = vand.u32 %v832, 4294901760
    %1465 = vmatpush1.msra.mxu0 %v1464
    %1466 = vmatprep.subr.mxu0 0.0
    %v1467 = vand.u32 %v831, 4294901760
    %1468 = vmatpush1.msra.mxu0 %v1467
    %1469 = vmatprep.subr.mxu0 0.0
    %v1470 = vand.u32 %v830, 4294901760
    %1471 = vmatpush1.msra.mxu0 %v1470
    %1472 = vmatprep.subr.mxu0 0.0
    %v1473 = vand.u32 %v829, 4294901760
    %1474 = vmatpush1.msra.mxu0 %v1473
    %1475 = vmatprep.subr.mxu0 0.0
    %v1476 = vand.u32 %v828, 4294901760
    %1477 = vmatpush1.msra.mxu0 %v1476
    %1478 = vmatprep.subr.mxu0 0.0
    %v1479 = vand.u32 %v827, 4294901760
    %1480 = vmatpush1.msra.mxu0 %v1479
    %1481 = vmatprep.subr.mxu0 0.0
    %v1482 = vand.u32 %v826, 4294901760
    %1483 = vmatpush1.msra.mxu0 %v1482
    %1484 = vmatprep.subr.mxu0 0.0
    %v1485 = vand.u32 %v825, 4294901760
    %1486 = vmatpush1.msra.mxu0 %v1485
    %1487 = vmatprep.subr.mxu0 0.0
    %1488 = vmatpush2.msra.mxu0 0.0
    %1489 = vmatprep.subr.mxu0 0.0
    %1490 = vmatpush2.msra.mxu0 0.0
    %1491 = vmatprep.subr.mxu0 0.0
    %1492 = vmatpush2.msra.mxu0 0.0
    %1493 = vmatprep.subr.mxu0 0.0
    %1494 = vmatpush2.msra.mxu0 0.0
    %1495 = vmatprep.subr.mxu0 0.0
    %1496 = vmatpush2.msra.mxu0 0.0
    %1497 = vmatprep.subr.mxu0 0.0
    %1498 = vmatpush2.msra.mxu0 0.0
    %1499 = vmatprep.subr.mxu0 0.0
    %1500 = vmatpush2.msra.mxu0 0.0
    %1501 = vmatprep.subr.mxu0 0.0
    %1502 = vmatpush2.msra.mxu0 0.0
    %1503 = vmatprep.subr.mxu0 0.0
    %1504 = vmatpush2.msra.mxu0 0.0
    %1505 = vmatprep.subr.mxu0 0.0
    %1506 = vmatpush2.msra.mxu0 0.0
    %1507 = vmatprep.subr.mxu0 0.0
    %1508 = vmatpush2.msra.mxu0 0.0
    %1509 = vmatprep.subr.mxu0 0.0
    %1510 = vmatpush2.msra.mxu0 0.0
    %1511 = vmatprep.subr.mxu0 0.0
    %1512 = vmatpush2.msra.mxu0 0.0
    %1513 = vmatprep.subr.mxu0 0.0
    %1514 = vmatpush2.msra.mxu0 0.0
    %1515 = vmatprep.subr.mxu0 0.0
    %1516 = vmatpush2.msra.mxu0 0.0
    %1517 = vmatprep.subr.mxu0 0.0
    %1518 = vmatpush2.msra.mxu0 0.0
    %1519 = vmatprep.mubr.f32.mxu0 0.0
    %v1520 = vand.u32 %v823, 4294901760
    %1521 = vmatmul.mubr.f32.gmra.mxu0 %v1520
    %v1522 = vpop.f32.mrf.mxu0
    %v1523 = vadd.f32 %v1430, %v1522
    %v1524 = vpop.f32.mrf.mxu0
    %1525 = vmatprep.mubr.f32.mxu0 0.0
    %v1526 = vand.u32 %v824, 4294901760
    %1527 = vmatmul.mubr.f32.gmra.mxu0 %v1526
    %v1528 = vpop.f32.mrf.mxu0
    %v1529 = vadd.f32 %v1436, %v1528
    %v1530 = vpop.f32.mrf.mxu0
    %1531 = vdwg.mxu0
    %1532 = vst [vmem:[#allocation8] sm:$0xff] %v1523
    %1533 = vst [vmem:[#allocation8 + $0x8] sm:$0xff] %v1529
    // Predicated region
    $region34: #{tpu_custom_call.1} parent=1 // pred_check
      _
    $region35: #{tpu_custom_call.1} parent=1 // pred_check_branch
      %1535 = sbr.rel (0) target = $region37
    $region36: #{tpu_custom_call.1} parent=1 // pred_region
      %s1537 = ssub.s32 256, 256
      %1538 = vsyncadd [#allocation4], %s1537
      %s1539 = sshll.u32 [#allocation8], 4
      %s1540 = int_to_ptr.vmem [resolvable:$true] %s1539
      %1545 = dma.vmem_to_hbm [thread:$0]  %s1540, 256, %s5, [#allocation4], 128, 128, 8
    $region37: #{tpu_custom_call.1} parent=1 // pred_fallthru
      _
    // Predicated region
    $region38: #{tpu_custom_call.1} parent=1 // pred_check
      _
    $region39: #{tpu_custom_call.1} parent=1 // pred_check_branch
      %1547 = sbr.rel (0) target = $region41
    $region40: #{tpu_custom_call.1} parent=1 // pred_region
      %1548 = dma.done [#allocation4], 256
    $region41: #{tpu_custom_call.1} parent=1 // pred_fallthru
      _
    %1549 = vsyncpa [#allocation3], 1
    %1550 = vsyncpa [#allocation6], 1
    %1551 = vsyncpa [#allocation4], 1

</llo_original>
